<compile_context>
chip_gen: v6e
topology: v6e:2x2x1
jax: 0.10.0
libtpu: 0.0.40
codegen_flags: <defaults>
</compile_context>

<pallas_src>
import jax
import jax.numpy as jnp
from jax.experimental import pallas as pl
from jax.experimental.pallas import tpu as pltpu

NEG_SLOPE = 0.2  # LeakyReLU(0.2)


# ----------------------------------------------------------------------------
# Fused DPCG kernel (one batch element per grid step)
# ----------------------------------------------------------------------------
def _dpcg_kernel(x0_ref, x1_ref,
                 m1a_ref, b1a_ref, m1b_ref, b1b_ref,
                 m2a_ref, b2a_ref, m2b_ref, b2b_ref,
                 o0_ref, o1_ref, pad_ref):
    """x*_ref / o*_ref: (H, W*C) lane-dense activations.
    m*_ref: (nb, K, W*Cin, W*Cout) pre-expanded banded conv matrices.
    b*_ref: (nb, 1, W*Cout) lane-tiled biases.
    pad_ref: (H + Kmax - 1, W*C) VMEM scratch for the row halo.
    """
    H, WC = x0_ref.shape
    nb = m1a_ref.shape[0]
    k1 = m1a_ref.shape[1]
    k2 = m2a_ref.shape[1]

    def conv(x, m_ref, b_ref, blk, kh):
        """'same' KxK stride-1 conv on the (H, W*Cin) view -> (H, W*Cout)."""
        if kh == 1:
            # 1x1 conv: one block-diagonal matmul, no halo handling.
            acc = jnp.dot(x, m_ref[blk, 0], preferred_element_type=jnp.float32)
        else:
            ph = kh // 2
            # zero-fill the row halo and drop the interior rows in.
            pad_ref[...] = jnp.zeros_like(pad_ref)
            pad_ref[pl.ds(ph, H), :] = x
            acc = jnp.zeros((H, m_ref.shape[-1]), jnp.float32)
            for dy in range(kh):                       # static tap-row loop
                acc = acc + jnp.dot(pad_ref[pl.ds(dy, H), :], m_ref[blk, dy],
                                    preferred_element_type=jnp.float32)
        return acc + b_ref[blk]                        # (1, W*Cout) broadcast

    def lrelu(v):
        return jnp.where(v > 0, v, NEG_SLOPE * v)

    x0 = x0_ref[...]
    x1 = x1_ref[...]
    for i in range(nb):                                # static DPCB chain
        # body1: conv(k1) -> LeakyReLU(0.2) -> conv(k1)
        f1 = conv(lrelu(conv(x0, m1a_ref, b1a_ref, i, k1)),
                  m1b_ref, b1b_ref, i, k1)
        # body2: conv(k2) -> LeakyReLU(0.2) -> conv(k2)
        f2 = conv(lrelu(conv(x1, m2a_ref, b2a_ref, i, k2)),
                  m2b_ref, b2b_ref, i, k2)
        x0 = x0 + f1 * f2
        x1 = x1 + f2
    # In-place-list semantics of the PyTorch module: the trailing residual
    # add in DPCG.forward doubles the chain output.
    o0_ref[...] = 2.0 * x0
    o1_ref[...] = 2.0 * x1


# ----------------------------------------------------------------------------
# Weight expansion: KxK HWIO conv -> banded (W*Cin, W*Cout) matrices
# ----------------------------------------------------------------------------
def expand_conv_weight(w, W):
    """HWIO (KH, KW, Cin, Cout) -> (KH, W*Cin, W*Cout) so a 'same' conv along
    width becomes a plain matmul on the lane-dense (H, W*Cin) view.
    (Tiny at these sizes; done once in the XLA wrapper.)"""
    KH, KW, Cin, Cout = w.shape
    pad = KW // 2
    a = jnp.arange(W)[:, None]          # input column
    b = jnp.arange(W)[None, :]          # output column
    # A[dx, a, b] == 1 iff input col a feeds output col b through width-tap dx.
    A = jnp.stack([(a == b + (dx - pad)).astype(jnp.float32)
                   for dx in range(KW)], axis=0)            # (KW, W, W)
    M = jnp.einsum('dab,kdio->kaibo', A, w)                  # (KH, W, Cin, W, Cout)
    return M.reshape(KH, W * Cin, W * Cout)


def expand_dpcg_params(params, W):
    ew = {}
    for name in ('1a', '1b', '2a', '2b'):
        ew['m' + name] = jnp.stack(
            [expand_conv_weight(p['w' + name], W) for p in params], axis=0)
        ew['b' + name] = jnp.stack(
            [jnp.tile(p['b' + name], W)[None, :] for p in params], axis=0)
    return ew


# ----------------------------------------------------------------------------
# Pallas wrapper
# ----------------------------------------------------------------------------
def dpcg_pallas(x0, x1, ew):
    """x0, x1: (N, H, W*C) float32 lane-dense activations."""
    N, H, WC = x0.shape
    k1 = ew['m1a'].shape[1]
    k2 = ew['m2a'].shape[1]
    khmax = max(k1, k2)

    def full_spec(arr):
        nd = arr.ndim
        return pl.BlockSpec(arr.shape, lambda n: (0,) * nd)

    act_spec = pl.BlockSpec((None, H, WC), lambda n: (n, 0, 0))
    weights = (ew['m1a'], ew['b1a'], ew['m1b'], ew['b1b'],
               ew['m2a'], ew['b2a'], ew['m2b'], ew['b2b'])

    return pl.pallas_call(
        _dpcg_kernel,
        out_shape=(jax.ShapeDtypeStruct((N, H, WC), jnp.float32),
                   jax.ShapeDtypeStruct((N, H, WC), jnp.float32)),
        grid=(N,),
        in_specs=[act_spec, act_spec] + [full_spec(w) for w in weights],
        out_specs=(act_spec, act_spec),
        scratch_shapes=[pltpu.VMEM((H + khmax - 1, WC), jnp.float32)],
        compiler_params=pltpu.CompilerParams(
            dimension_semantics=("parallel",)),   # v7x: shard batch over 2 TCs
    )(x0, x1, *weights)


def dpcg_forward(x0_nchw, x1_nchw, params):
    """PyTorch-convention NCHW in / NCHW out."""
    N, C0, H, W = x0_nchw.shape
    C1 = x1_nchw.shape[1]
    assert C0 == C1, "DPCB update x[1] + f2 requires nf1 == nf2"
    # NCHW -> NHWC -> lane-dense (N, H, W*C)   (pure layout, no compute)
    x0 = jnp.transpose(x0_nchw, (0, 2, 3, 1)).reshape(N, H, W * C0)
    x1 = jnp.transpose(x1_nchw, (0, 2, 3, 1)).reshape(N, H, W * C1)
    ew = expand_dpcg_params(params, W)
    y0, y1 = dpcg_pallas(x0, x1, ew)
    y0 = jnp.transpose(y0.reshape(N, H, W, C0), (0, 3, 1, 2))
    y1 = jnp.transpose(y1.reshape(N, H, W, C1), (0, 3, 1, 2))
    return y0, y1


# ----------------------------------------------------------------------------
# Pure-JAX reference (same math, XLA convs) for the correctness check
# ----------------------------------------------------------------------------
def dpcg_reference(x0_nchw, x1_nchw, params):
    def conv(x, w, b):  # x NHWC, w HWIO
        y = jax.lax.conv_general_dilated(
            x, w, window_strides=(1, 1), padding='SAME',
            dimension_numbers=('NHWC', 'HWIO', 'NHWC'))
        return y + b

    def lrelu(v):
        return jnp.where(v > 0, v, NEG_SLOPE * v)

    z0 = jnp.transpose(x0_nchw, (0, 2, 3, 1))
    z1 = jnp.transpose(x1_nchw, (0, 2, 3, 1))
    for p in params:
        f1 = conv(lrelu(conv(z0, p['w1a'], p['b1a'])), p['w1b'], p['b1b'])
        f2 = conv(lrelu(conv(z1, p['w2a'], p['b2a'])), p['w2b'], p['b2b'])
        z0 = z0 + f1 * f2
        z1 = z1 + f2
    return (jnp.transpose(2.0 * z0, (0, 3, 1, 2)),
            jnp.transpose(2.0 * z1, (0, 3, 1, 2)))


# ----------------------------------------------------------------------------
# Deterministic parameter init (synthetic weights, HWIO layout)
# ----------------------------------------------------------------------------
def init_dpcg_params(key, nf1, nf2, ksize1, ksize2, nb):
    params = []
    for i in range(nb):
        keys = jax.random.split(jax.random.fold_in(key, i), 8)
        params.append(dict(
            w1a=0.1 * jax.random.normal(keys[0], (ksize1, ksize1, nf1, nf1), jnp.float32),
            b1a=0.01 * jax.random.normal(keys[1], (nf1,), jnp.float32),
            w1b=0.1 * jax.random.normal(keys[2], (ksize1, ksize1, nf1, nf1), jnp.float32),
            b1b=0.01 * jax.random.normal(keys[3], (nf1,), jnp.float32),
            w2a=0.1 * jax.random.normal(keys[4], (ksize2, ksize2, nf2, nf1), jnp.float32),
            b2a=0.01 * jax.random.normal(keys[5], (nf1,), jnp.float32),
            w2b=0.1 * jax.random.normal(keys[6], (ksize2, ksize2, nf1, nf1), jnp.float32),
            b2b=0.01 * jax.random.normal(keys[7], (nf1,), jnp.float32),
        ))
    return params


# ----------------------------------------------------------------------------
# Main
# ----------------------------------------------------------------------------
if __name__ == "__main__":
    # nf1 == nf2 required by the reference forward (x[1] + f2 must match shapes).
    nf1, nf2 = 8, 8
    ksize1, ksize2, nb = 3, 1, 2
    N, H, W = 2, 16, 16          # W * nf1 = 128 -> exactly one lane width

    key = jax.random.PRNGKey(0)
    k0, k1, kp = jax.random.split(key, 3)

    # PyTorch-style NCHW example inputs
    x0_nchw = jax.random.normal(k0, (N, nf1, H, W), jnp.float32)
    x1_nchw = jax.random.normal(k1, (N, nf2, H, W), jnp.float32)
    params = init_dpcg_params(kp, nf1, nf2, ksize1, ksize2, nb)

    fwd = jax.jit(lambda a, b: dpcg_forward(a, b, params))
    y0, y1 = fwd(x0_nchw, x1_nchw)
    jax.block_until_ready((y0, y1))

    # correctness check against a pure-JAX/XLA implementation of the module
    r0, r1 = jax.jit(lambda a, b: dpcg_reference(a, b, params))(x0_nchw, x1_nchw)
    err = max(float(jnp.max(jnp.abs(y0 - r0))), float(jnp.max(jnp.abs(y1 - r1))))
    if err > 5e-2:
        raise RuntimeError(f"Pallas DPCG mismatch vs reference: max|diff|={err}")

    print("KERNEL_OK")
</pallas_src>

<mosaic_0001>
module attributes {stable_mosaic.version = 11 : i64} {
  func.func @_dpcg_kernel(%arg0: i32, %arg1: memref<1x16x128xf32, #tpu.memory_space<vmem>>, %arg2: memref<1x16x128xf32, #tpu.memory_space<vmem>>, %arg3: memref<2x3x128x128xf32, #tpu.memory_space<vmem>>, %arg4: memref<2x1x128xf32, #tpu.memory_space<vmem>>, %arg5: memref<2x3x128x128xf32, #tpu.memory_space<vmem>>, %arg6: memref<2x1x128xf32, #tpu.memory_space<vmem>>, %arg7: memref<2x1x128x128xf32, #tpu.memory_space<vmem>>, %arg8: memref<2x1x128xf32, #tpu.memory_space<vmem>>, %arg9: memref<2x1x128x128xf32, #tpu.memory_space<vmem>>, %arg10: memref<2x1x128xf32, #tpu.memory_space<vmem>>, %arg11: memref<1x16x128xf32, #tpu.memory_space<vmem>>, %arg12: memref<1x16x128xf32, #tpu.memory_space<vmem>>, %arg13: memref<18x128xf32, #tpu.memory_space<vmem>>) attributes {dimension_semantics = [#tpu.dimension_semantics<parallel>], iteration_bounds = array<i64: 2>, scalar_prefetch = 0 : i64, scratch_operands = 1 : i64, tpu.core_type = #tpu.core_type<tc>, window_params = [{transform_indices = @transform_0, window_bounds = array<i64: 1, 16, 128>}, {transform_indices = @transform_1, window_bounds = array<i64: 1, 16, 128>}, {pipeline_mode = #tpu.pipeline_mode<synchronous>, transform_indices = @transform_2, window_bounds = array<i64: 2, 3, 128, 128>}, {pipeline_mode = #tpu.pipeline_mode<synchronous>, transform_indices = @transform_3, window_bounds = array<i64: 2, 1, 128>}, {pipeline_mode = #tpu.pipeline_mode<synchronous>, transform_indices = @transform_4, window_bounds = array<i64: 2, 3, 128, 128>}, {pipeline_mode = #tpu.pipeline_mode<synchronous>, transform_indices = @transform_5, window_bounds = array<i64: 2, 1, 128>}, {pipeline_mode = #tpu.pipeline_mode<synchronous>, transform_indices = @transform_6, window_bounds = array<i64: 2, 1, 128, 128>}, {pipeline_mode = #tpu.pipeline_mode<synchronous>, transform_indices = @transform_7, window_bounds = array<i64: 2, 1, 128>}, {pipeline_mode = #tpu.pipeline_mode<synchronous>, transform_indices = @transform_8, window_bounds = array<i64: 2, 1, 128, 128>}, {pipeline_mode = #tpu.pipeline_mode<synchronous>, transform_indices = @transform_9, window_bounds = array<i64: 2, 1, 128>}, {transform_indices = @transform_10, window_bounds = array<i64: 1, 16, 128>}, {transform_indices = @transform_11, window_bounds = array<i64: 1, 16, 128>}]} {
    %c0 = arith.constant 0 : index
    %c0_0 = arith.constant 0 : index
    %c0_1 = arith.constant 0 : index
    %0 = vector.load %arg1[%c0, %c0_0, %c0_1] : memref<1x16x128xf32, #tpu.memory_space<vmem>>, vector<1x16x128xf32>
    %1 = vector.shape_cast %0 : vector<1x16x128xf32> to vector<16x128xf32>
    %c0_2 = arith.constant 0 : index
    %c0_3 = arith.constant 0 : index
    %c0_4 = arith.constant 0 : index
    %2 = vector.load %arg2[%c0_2, %c0_3, %c0_4] : memref<1x16x128xf32, #tpu.memory_space<vmem>>, vector<1x16x128xf32>
    %3 = vector.shape_cast %2 : vector<1x16x128xf32> to vector<16x128xf32>
    %cst = arith.constant 0.000000e+00 : f32
    %4 = vector.broadcast %cst : f32 to vector<18x128xf32>
    %c0_5 = arith.constant 0 : index
    %c0_6 = arith.constant 0 : index
    %5 = vector.load %arg13[%c0_5, %c0_6] : memref<18x128xf32, #tpu.memory_space<vmem>>, vector<18x128xf32>
    tpu.vector_store %arg13[%c0_5, %c0_6], %4 {strides = array<i32>} : memref<18x128xf32, #tpu.memory_space<vmem>>, vector<18x128xf32>,
    %c1 = arith.constant 1 : index
    %c0_7 = arith.constant 0 : index
    %6 = vector.load %arg13[%c1, %c0_7] : memref<18x128xf32, #tpu.memory_space<vmem>>, vector<16x128xf32>
    tpu.vector_store %arg13[%c1, %c0_7], %1 {strides = array<i32>} : memref<18x128xf32, #tpu.memory_space<vmem>>, vector<16x128xf32>,
    %cst_8 = arith.constant 0.000000e+00 : f32
    %7 = vector.broadcast %cst_8 : f32 to vector<16x128xf32>
    %c0_9 = arith.constant 0 : index
    %c0_10 = arith.constant 0 : index
    %8 = vector.load %arg13[%c0_9, %c0_10] : memref<18x128xf32, #tpu.memory_space<vmem>>, vector<16x128xf32>
    %c0_11 = arith.constant 0 : index
    %c0_12 = arith.constant 0 : index
    %c0_13 = arith.constant 0 : index
    %c0_14 = arith.constant 0 : index
    %9 = vector.load %arg3[%c0_11, %c0_12, %c0_13, %c0_14] : memref<2x3x128x128xf32, #tpu.memory_space<vmem>>, vector<1x1x128x128xf32>
    %10 = vector.shape_cast %9 : vector<1x1x128x128xf32> to vector<128x128xf32>
    %cst_15 = arith.constant dense<0.000000e+00> : vector<16x128xf32>
    %11 = tpu.matmul %8, %10, %cst_15 {dimension_numbers = #tpu.dot_dimension_numbers<[1], [0], [0], [1], [0, 0, 1, 1], [], []>} : vector<16x128xf32>, vector<128x128xf32>, vector<16x128xf32> -> vector<16x128xf32>
    %12 = arith.addf %7, %11 : vector<16x128xf32>
    %c1_16 = arith.constant 1 : index
    %c0_17 = arith.constant 0 : index
    %13 = vector.load %arg13[%c1_16, %c0_17] : memref<18x128xf32, #tpu.memory_space<vmem>>, vector<16x128xf32>
    %c0_18 = arith.constant 0 : index
    %c1_19 = arith.constant 1 : index
    %c0_20 = arith.constant 0 : index
    %c0_21 = arith.constant 0 : index
    %14 = vector.load %arg3[%c0_18, %c1_19, %c0_20, %c0_21] : memref<2x3x128x128xf32, #tpu.memory_space<vmem>>, vector<1x1x128x128xf32>
    %15 = vector.shape_cast %14 : vector<1x1x128x128xf32> to vector<128x128xf32>
    %cst_22 = arith.constant dense<0.000000e+00> : vector<16x128xf32>
    %16 = tpu.matmul %13, %15, %cst_22 {dimension_numbers = #tpu.dot_dimension_numbers<[1], [0], [0], [1], [0, 0, 1, 1], [], []>} : vector<16x128xf32>, vector<128x128xf32>, vector<16x128xf32> -> vector<16x128xf32>
    %17 = arith.addf %12, %16 : vector<16x128xf32>
    %c2 = arith.constant 2 : index
    %c0_23 = arith.constant 0 : index
    %18 = vector.load %arg13[%c2, %c0_23] : memref<18x128xf32, #tpu.memory_space<vmem>>, vector<16x128xf32>
    %c0_24 = arith.constant 0 : index
    %c2_25 = arith.constant 2 : index
    %c0_26 = arith.constant 0 : index
    %c0_27 = arith.constant 0 : index
    %19 = vector.load %arg3[%c0_24, %c2_25, %c0_26, %c0_27] : memref<2x3x128x128xf32, #tpu.memory_space<vmem>>, vector<1x1x128x128xf32>
    %20 = vector.shape_cast %19 : vector<1x1x128x128xf32> to vector<128x128xf32>
    %cst_28 = arith.constant dense<0.000000e+00> : vector<16x128xf32>
    %21 = tpu.matmul %18, %20, %cst_28 {dimension_numbers = #tpu.dot_dimension_numbers<[1], [0], [0], [1], [0, 0, 1, 1], [], []>} : vector<16x128xf32>, vector<128x128xf32>, vector<16x128xf32> -> vector<16x128xf32>
    %22 = arith.addf %17, %21 : vector<16x128xf32>
    %c0_29 = arith.constant 0 : index
    %c0_30 = arith.constant 0 : index
    %c0_31 = arith.constant 0 : index
    %23 = vector.load %arg4[%c0_29, %c0_30, %c0_31] : memref<2x1x128xf32, #tpu.memory_space<vmem>>, vector<1x1x128xf32>
    %24 = vector.shape_cast %23 : vector<1x1x128xf32> to vector<1x128xf32>
    %25 = vector.broadcast %24 : vector<1x128xf32> to vector<16x128xf32>
    %26 = arith.addf %22, %25 : vector<16x128xf32>
    %cst_32 = arith.constant 0.000000e+00 : f32
    %27 = vector.broadcast %cst_32 : f32 to vector<16x128xf32>
    %28 = arith.cmpf ogt, %26, %27 : vector<16x128xf32>
    %cst_33 = arith.constant 2.000000e-01 : f32
    %29 = vector.broadcast %cst_33 : f32 to vector<16x128xf32>
    %30 = arith.mulf %29, %26 : vector<16x128xf32>
    %31 = arith.select %28, %26, %30 : vector<16x128xi1>, vector<16x128xf32>
    %cst_34 = arith.constant 0.000000e+00 : f32
    %32 = vector.broadcast %cst_34 : f32 to vector<18x128xf32>
    %c0_35 = arith.constant 0 : index
    %c0_36 = arith.constant 0 : index
    %33 = vector.load %arg13[%c0_35, %c0_36] : memref<18x128xf32, #tpu.memory_space<vmem>>, vector<18x128xf32>
    tpu.vector_store %arg13[%c0_35, %c0_36], %32 {strides = array<i32>} : memref<18x128xf32, #tpu.memory_space<vmem>>, vector<18x128xf32>,
    %c1_37 = arith.constant 1 : index
    %c0_38 = arith.constant 0 : index
    %34 = vector.load %arg13[%c1_37, %c0_38] : memref<18x128xf32, #tpu.memory_space<vmem>>, vector<16x128xf32>
    tpu.vector_store %arg13[%c1_37, %c0_38], %31 {strides = array<i32>} : memref<18x128xf32, #tpu.memory_space<vmem>>, vector<16x128xf32>,
    %cst_39 = arith.constant 0.000000e+00 : f32
    %35 = vector.broadcast %cst_39 : f32 to vector<16x128xf32>
    %c0_40 = arith.constant 0 : index
    %c0_41 = arith.constant 0 : index
    %36 = vector.load %arg13[%c0_40, %c0_41] : memref<18x128xf32, #tpu.memory_space<vmem>>, vector<16x128xf32>
    %c0_42 = arith.constant 0 : index
    %c0_43 = arith.constant 0 : index
    %c0_44 = arith.constant 0 : index
    %c0_45 = arith.constant 0 : index
    %37 = vector.load %arg5[%c0_42, %c0_43, %c0_44, %c0_45] : memref<2x3x128x128xf32, #tpu.memory_space<vmem>>, vector<1x1x128x128xf32>
    %38 = vector.shape_cast %37 : vector<1x1x128x128xf32> to vector<128x128xf32>
    %cst_46 = arith.constant dense<0.000000e+00> : vector<16x128xf32>
    %39 = tpu.matmul %36, %38, %cst_46 {dimension_numbers = #tpu.dot_dimension_numbers<[1], [0], [0], [1], [0, 0, 1, 1], [], []>} : vector<16x128xf32>, vector<128x128xf32>, vector<16x128xf32> -> vector<16x128xf32>
    %40 = arith.addf %35, %39 : vector<16x128xf32>
    %c1_47 = arith.constant 1 : index
    %c0_48 = arith.constant 0 : index
    %41 = vector.load %arg13[%c1_47, %c0_48] : memref<18x128xf32, #tpu.memory_space<vmem>>, vector<16x128xf32>
    %c0_49 = arith.constant 0 : index
    %c1_50 = arith.constant 1 : index
    %c0_51 = arith.constant 0 : index
    %c0_52 = arith.constant 0 : index
    %42 = vector.load %arg5[%c0_49, %c1_50, %c0_51, %c0_52] : memref<2x3x128x128xf32, #tpu.memory_space<vmem>>, vector<1x1x128x128xf32>
    %43 = vector.shape_cast %42 : vector<1x1x128x128xf32> to vector<128x128xf32>
    %cst_53 = arith.constant dense<0.000000e+00> : vector<16x128xf32>
    %44 = tpu.matmul %41, %43, %cst_53 {dimension_numbers = #tpu.dot_dimension_numbers<[1], [0], [0], [1], [0, 0, 1, 1], [], []>} : vector<16x128xf32>, vector<128x128xf32>, vector<16x128xf32> -> vector<16x128xf32>
    %45 = arith.addf %40, %44 : vector<16x128xf32>
    %c2_54 = arith.constant 2 : index
    %c0_55 = arith.constant 0 : index
    %46 = vector.load %arg13[%c2_54, %c0_55] : memref<18x128xf32, #tpu.memory_space<vmem>>, vector<16x128xf32>
    %c0_56 = arith.constant 0 : index
    %c2_57 = arith.constant 2 : index
    %c0_58 = arith.constant 0 : index
    %c0_59 = arith.constant 0 : index
    %47 = vector.load %arg5[%c0_56, %c2_57, %c0_58, %c0_59] : memref<2x3x128x128xf32, #tpu.memory_space<vmem>>, vector<1x1x128x128xf32>
    %48 = vector.shape_cast %47 : vector<1x1x128x128xf32> to vector<128x128xf32>
    %cst_60 = arith.constant dense<0.000000e+00> : vector<16x128xf32>
    %49 = tpu.matmul %46, %48, %cst_60 {dimension_numbers = #tpu.dot_dimension_numbers<[1], [0], [0], [1], [0, 0, 1, 1], [], []>} : vector<16x128xf32>, vector<128x128xf32>, vector<16x128xf32> -> vector<16x128xf32>
    %50 = arith.addf %45, %49 : vector<16x128xf32>
    %c0_61 = arith.constant 0 : index
    %c0_62 = arith.constant 0 : index
    %c0_63 = arith.constant 0 : index
    %51 = vector.load %arg6[%c0_61, %c0_62, %c0_63] : memref<2x1x128xf32, #tpu.memory_space<vmem>>, vector<1x1x128xf32>
    %52 = vector.shape_cast %51 : vector<1x1x128xf32> to vector<1x128xf32>
    %53 = vector.broadcast %52 : vector<1x128xf32> to vector<16x128xf32>
    %54 = arith.addf %50, %53 : vector<16x128xf32>
    %c0_64 = arith.constant 0 : index
    %c0_65 = arith.constant 0 : index
    %c0_66 = arith.constant 0 : index
    %c0_67 = arith.constant 0 : index
    %55 = vector.load %arg7[%c0_64, %c0_65, %c0_66, %c0_67] : memref<2x1x128x128xf32, #tpu.memory_space<vmem>>, vector<1x1x128x128xf32>
    %56 = vector.shape_cast %55 : vector<1x1x128x128xf32> to vector<128x128xf32>
    %cst_68 = arith.constant dense<0.000000e+00> : vector<16x128xf32>
    %57 = tpu.matmul %3, %56, %cst_68 {dimension_numbers = #tpu.dot_dimension_numbers<[1], [0], [0], [1], [0, 0, 1, 1], [], []>} : vector<16x128xf32>, vector<128x128xf32>, vector<16x128xf32> -> vector<16x128xf32>
    %c0_69 = arith.constant 0 : index
    %c0_70 = arith.constant 0 : index
    %c0_71 = arith.constant 0 : index
    %58 = vector.load %arg8[%c0_69, %c0_70, %c0_71] : memref<2x1x128xf32, #tpu.memory_space<vmem>>, vector<1x1x128xf32>
    %59 = vector.shape_cast %58 : vector<1x1x128xf32> to vector<1x128xf32>
    %60 = vector.broadcast %59 : vector<1x128xf32> to vector<16x128xf32>
    %61 = arith.addf %57, %60 : vector<16x128xf32>
    %cst_72 = arith.constant 0.000000e+00 : f32
    %62 = vector.broadcast %cst_72 : f32 to vector<16x128xf32>
    %63 = arith.cmpf ogt, %61, %62 : vector<16x128xf32>
    %cst_73 = arith.constant 2.000000e-01 : f32
    %64 = vector.broadcast %cst_73 : f32 to vector<16x128xf32>
    %65 = arith.mulf %64, %61 : vector<16x128xf32>
    %66 = arith.select %63, %61, %65 : vector<16x128xi1>, vector<16x128xf32>
    %c0_74 = arith.constant 0 : index
    %c0_75 = arith.constant 0 : index
    %c0_76 = arith.constant 0 : index
    %c0_77 = arith.constant 0 : index
    %67 = vector.load %arg9[%c0_74, %c0_75, %c0_76, %c0_77] : memref<2x1x128x128xf32, #tpu.memory_space<vmem>>, vector<1x1x128x128xf32>
    %68 = vector.shape_cast %67 : vector<1x1x128x128xf32> to vector<128x128xf32>
    %cst_78 = arith.constant dense<0.000000e+00> : vector<16x128xf32>
    %69 = tpu.matmul %66, %68, %cst_78 {dimension_numbers = #tpu.dot_dimension_numbers<[1], [0], [0], [1], [0, 0, 1, 1], [], []>} : vector<16x128xf32>, vector<128x128xf32>, vector<16x128xf32> -> vector<16x128xf32>
    %c0_79 = arith.constant 0 : index
    %c0_80 = arith.constant 0 : index
    %c0_81 = arith.constant 0 : index
    %70 = vector.load %arg10[%c0_79, %c0_80, %c0_81] : memref<2x1x128xf32, #tpu.memory_space<vmem>>, vector<1x1x128xf32>
    %71 = vector.shape_cast %70 : vector<1x1x128xf32> to vector<1x128xf32>
    %72 = vector.broadcast %71 : vector<1x128xf32> to vector<16x128xf32>
    %73 = arith.addf %69, %72 : vector<16x128xf32>
    %74 = arith.mulf %54, %73 : vector<16x128xf32>
    %75 = arith.addf %1, %74 : vector<16x128xf32>
    %76 = arith.addf %3, %73 : vector<16x128xf32>
    %cst_82 = arith.constant 0.000000e+00 : f32
    %77 = vector.broadcast %cst_82 : f32 to vector<18x128xf32>
    %c0_83 = arith.constant 0 : index
    %c0_84 = arith.constant 0 : index
    %78 = vector.load %arg13[%c0_83, %c0_84] : memref<18x128xf32, #tpu.memory_space<vmem>>, vector<18x128xf32>
    tpu.vector_store %arg13[%c0_83, %c0_84], %77 {strides = array<i32>} : memref<18x128xf32, #tpu.memory_space<vmem>>, vector<18x128xf32>,
    %c1_85 = arith.constant 1 : index
    %c0_86 = arith.constant 0 : index
    %79 = vector.load %arg13[%c1_85, %c0_86] : memref<18x128xf32, #tpu.memory_space<vmem>>, vector<16x128xf32>
    tpu.vector_store %arg13[%c1_85, %c0_86], %75 {strides = array<i32>} : memref<18x128xf32, #tpu.memory_space<vmem>>, vector<16x128xf32>,
    %cst_87 = arith.constant 0.000000e+00 : f32
    %80 = vector.broadcast %cst_87 : f32 to vector<16x128xf32>
    %c0_88 = arith.constant 0 : index
    %c0_89 = arith.constant 0 : index
    %81 = vector.load %arg13[%c0_88, %c0_89] : memref<18x128xf32, #tpu.memory_space<vmem>>, vector<16x128xf32>
    %c1_90 = arith.constant 1 : index
    %c0_91 = arith.constant 0 : index
    %c0_92 = arith.constant 0 : index
    %c0_93 = arith.constant 0 : index
    %82 = vector.load %arg3[%c1_90, %c0_91, %c0_92, %c0_93] : memref<2x3x128x128xf32, #tpu.memory_space<vmem>>, vector<1x1x128x128xf32>
    %83 = vector.shape_cast %82 : vector<1x1x128x128xf32> to vector<128x128xf32>
    %cst_94 = arith.constant dense<0.000000e+00> : vector<16x128xf32>
    %84 = tpu.matmul %81, %83, %cst_94 {dimension_numbers = #tpu.dot_dimension_numbers<[1], [0], [0], [1], [0, 0, 1, 1], [], []>} : vector<16x128xf32>, vector<128x128xf32>, vector<16x128xf32> -> vector<16x128xf32>
    %85 = arith.addf %80, %84 : vector<16x128xf32>
    %c1_95 = arith.constant 1 : index
    %c0_96 = arith.constant 0 : index
    %86 = vector.load %arg13[%c1_95, %c0_96] : memref<18x128xf32, #tpu.memory_space<vmem>>, vector<16x128xf32>
    %c1_97 = arith.constant 1 : index
    %c1_98 = arith.constant 1 : index
    %c0_99 = arith.constant 0 : index
    %c0_100 = arith.constant 0 : index
    %87 = vector.load %arg3[%c1_97, %c1_98, %c0_99, %c0_100] : memref<2x3x128x128xf32, #tpu.memory_space<vmem>>, vector<1x1x128x128xf32>
    %88 = vector.shape_cast %87 : vector<1x1x128x128xf32> to vector<128x128xf32>
    %cst_101 = arith.constant dense<0.000000e+00> : vector<16x128xf32>
    %89 = tpu.matmul %86, %88, %cst_101 {dimension_numbers = #tpu.dot_dimension_numbers<[1], [0], [0], [1], [0, 0, 1, 1], [], []>} : vector<16x128xf32>, vector<128x128xf32>, vector<16x128xf32> -> vector<16x128xf32>
    %90 = arith.addf %85, %89 : vector<16x128xf32>
    %c2_102 = arith.constant 2 : index
    %c0_103 = arith.constant 0 : index
    %91 = vector.load %arg13[%c2_102, %c0_103] : memref<18x128xf32, #tpu.memory_space<vmem>>, vector<16x128xf32>
    %c1_104 = arith.constant 1 : index
    %c2_105 = arith.constant 2 : index
    %c0_106 = arith.constant 0 : index
    %c0_107 = arith.constant 0 : index
    %92 = vector.load %arg3[%c1_104, %c2_105, %c0_106, %c0_107] : memref<2x3x128x128xf32, #tpu.memory_space<vmem>>, vector<1x1x128x128xf32>
    %93 = vector.shape_cast %92 : vector<1x1x128x128xf32> to vector<128x128xf32>
    %cst_108 = arith.constant dense<0.000000e+00> : vector<16x128xf32>
    %94 = tpu.matmul %91, %93, %cst_108 {dimension_numbers = #tpu.dot_dimension_numbers<[1], [0], [0], [1], [0, 0, 1, 1], [], []>} : vector<16x128xf32>, vector<128x128xf32>, vector<16x128xf32> -> vector<16x128xf32>
    %95 = arith.addf %90, %94 : vector<16x128xf32>
    %c1_109 = arith.constant 1 : index
    %c0_110 = arith.constant 0 : index
    %c0_111 = arith.constant 0 : index
    %96 = vector.load %arg4[%c1_109, %c0_110, %c0_111] : memref<2x1x128xf32, #tpu.memory_space<vmem>>, vector<1x1x128xf32>
    %97 = vector.shape_cast %96 : vector<1x1x128xf32> to vector<1x128xf32>
    %98 = vector.broadcast %97 : vector<1x128xf32> to vector<16x128xf32>
    %99 = arith.addf %95, %98 : vector<16x128xf32>
    %cst_112 = arith.constant 0.000000e+00 : f32
    %100 = vector.broadcast %cst_112 : f32 to vector<16x128xf32>
    %101 = arith.cmpf ogt, %99, %100 : vector<16x128xf32>
    %cst_113 = arith.constant 2.000000e-01 : f32
    %102 = vector.broadcast %cst_113 : f32 to vector<16x128xf32>
    %103 = arith.mulf %102, %99 : vector<16x128xf32>
    %104 = arith.select %101, %99, %103 : vector<16x128xi1>, vector<16x128xf32>
    %cst_114 = arith.constant 0.000000e+00 : f32
    %105 = vector.broadcast %cst_114 : f32 to vector<18x128xf32>
    %c0_115 = arith.constant 0 : index
    %c0_116 = arith.constant 0 : index
    %106 = vector.load %arg13[%c0_115, %c0_116] : memref<18x128xf32, #tpu.memory_space<vmem>>, vector<18x128xf32>
    tpu.vector_store %arg13[%c0_115, %c0_116], %105 {strides = array<i32>} : memref<18x128xf32, #tpu.memory_space<vmem>>, vector<18x128xf32>,
    %c1_117 = arith.constant 1 : index
    %c0_118 = arith.constant 0 : index
    %107 = vector.load %arg13[%c1_117, %c0_118] : memref<18x128xf32, #tpu.memory_space<vmem>>, vector<16x128xf32>
    tpu.vector_store %arg13[%c1_117, %c0_118], %104 {strides = array<i32>} : memref<18x128xf32, #tpu.memory_space<vmem>>, vector<16x128xf32>,
    %cst_119 = arith.constant 0.000000e+00 : f32
    %108 = vector.broadcast %cst_119 : f32 to vector<16x128xf32>
    %c0_120 = arith.constant 0 : index
    %c0_121 = arith.constant 0 : index
    %109 = vector.load %arg13[%c0_120, %c0_121] : memref<18x128xf32, #tpu.memory_space<vmem>>, vector<16x128xf32>
    %c1_122 = arith.constant 1 : index
    %c0_123 = arith.constant 0 : index
    %c0_124 = arith.constant 0 : index
    %c0_125 = arith.constant 0 : index
    %110 = vector.load %arg5[%c1_122, %c0_123, %c0_124, %c0_125] : memref<2x3x128x128xf32, #tpu.memory_space<vmem>>, vector<1x1x128x128xf32>
    %111 = vector.shape_cast %110 : vector<1x1x128x128xf32> to vector<128x128xf32>
    %cst_126 = arith.constant dense<0.000000e+00> : vector<16x128xf32>
    %112 = tpu.matmul %109, %111, %cst_126 {dimension_numbers = #tpu.dot_dimension_numbers<[1], [0], [0], [1], [0, 0, 1, 1], [], []>} : vector<16x128xf32>, vector<128x128xf32>, vector<16x128xf32> -> vector<16x128xf32>
    %113 = arith.addf %108, %112 : vector<16x128xf32>
    %c1_127 = arith.constant 1 : index
    %c0_128 = arith.constant 0 : index
    %114 = vector.load %arg13[%c1_127, %c0_128] : memref<18x128xf32, #tpu.memory_space<vmem>>, vector<16x128xf32>
    %c1_129 = arith.constant 1 : index
    %c1_130 = arith.constant 1 : index
    %c0_131 = arith.constant 0 : index
    %c0_132 = arith.constant 0 : index
    %115 = vector.load %arg5[%c1_129, %c1_130, %c0_131, %c0_132] : memref<2x3x128x128xf32, #tpu.memory_space<vmem>>, vector<1x1x128x128xf32>
    %116 = vector.shape_cast %115 : vector<1x1x128x128xf32> to vector<128x128xf32>
    %cst_133 = arith.constant dense<0.000000e+00> : vector<16x128xf32>
    %117 = tpu.matmul %114, %116, %cst_133 {dimension_numbers = #tpu.dot_dimension_numbers<[1], [0], [0], [1], [0, 0, 1, 1], [], []>} : vector<16x128xf32>, vector<128x128xf32>, vector<16x128xf32> -> vector<16x128xf32>
    %118 = arith.addf %113, %117 : vector<16x128xf32>
    %c2_134 = arith.constant 2 : index
    %c0_135 = arith.constant 0 : index
    %119 = vector.load %arg13[%c2_134, %c0_135] : memref<18x128xf32, #tpu.memory_space<vmem>>, vector<16x128xf32>
    %c1_136 = arith.constant 1 : index
    %c2_137 = arith.constant 2 : index
    %c0_138 = arith.constant 0 : index
    %c0_139 = arith.constant 0 : index
    %120 = vector.load %arg5[%c1_136, %c2_137, %c0_138, %c0_139] : memref<2x3x128x128xf32, #tpu.memory_space<vmem>>, vector<1x1x128x128xf32>
    %121 = vector.shape_cast %120 : vector<1x1x128x128xf32> to vector<128x128xf32>
    %cst_140 = arith.constant dense<0.000000e+00> : vector<16x128xf32>
    %122 = tpu.matmul %119, %121, %cst_140 {dimension_numbers = #tpu.dot_dimension_numbers<[1], [0], [0], [1], [0, 0, 1, 1], [], []>} : vector<16x128xf32>, vector<128x128xf32>, vector<16x128xf32> -> vector<16x128xf32>
    %123 = arith.addf %118, %122 : vector<16x128xf32>
    %c1_141 = arith.constant 1 : index
    %c0_142 = arith.constant 0 : index
    %c0_143 = arith.constant 0 : index
    %124 = vector.load %arg6[%c1_141, %c0_142, %c0_143] : memref<2x1x128xf32, #tpu.memory_space<vmem>>, vector<1x1x128xf32>
    %125 = vector.shape_cast %124 : vector<1x1x128xf32> to vector<1x128xf32>
    %126 = vector.broadcast %125 : vector<1x128xf32> to vector<16x128xf32>
    %127 = arith.addf %123, %126 : vector<16x128xf32>
    %c1_144 = arith.constant 1 : index
    %c0_145 = arith.constant 0 : index
    %c0_146 = arith.constant 0 : index
    %c0_147 = arith.constant 0 : index
    %128 = vector.load %arg7[%c1_144, %c0_145, %c0_146, %c0_147] : memref<2x1x128x128xf32, #tpu.memory_space<vmem>>, vector<1x1x128x128xf32>
    %129 = vector.shape_cast %128 : vector<1x1x128x128xf32> to vector<128x128xf32>
    %cst_148 = arith.constant dense<0.000000e+00> : vector<16x128xf32>
    %130 = tpu.matmul %76, %129, %cst_148 {dimension_numbers = #tpu.dot_dimension_numbers<[1], [0], [0], [1], [0, 0, 1, 1], [], []>} : vector<16x128xf32>, vector<128x128xf32>, vector<16x128xf32> -> vector<16x128xf32>
    %c1_149 = arith.constant 1 : index
    %c0_150 = arith.constant 0 : index
    %c0_151 = arith.constant 0 : index
    %131 = vector.load %arg8[%c1_149, %c0_150, %c0_151] : memref<2x1x128xf32, #tpu.memory_space<vmem>>, vector<1x1x128xf32>
    %132 = vector.shape_cast %131 : vector<1x1x128xf32> to vector<1x128xf32>
    %133 = vector.broadcast %132 : vector<1x128xf32> to vector<16x128xf32>
    %134 = arith.addf %130, %133 : vector<16x128xf32>
    %cst_152 = arith.constant 0.000000e+00 : f32
    %135 = vector.broadcast %cst_152 : f32 to vector<16x128xf32>
    %136 = arith.cmpf ogt, %134, %135 : vector<16x128xf32>
    %cst_153 = arith.constant 2.000000e-01 : f32
    %137 = vector.broadcast %cst_153 : f32 to vector<16x128xf32>
    %138 = arith.mulf %137, %134 : vector<16x128xf32>
    %139 = arith.select %136, %134, %138 : vector<16x128xi1>, vector<16x128xf32>
    %c1_154 = arith.constant 1 : index
    %c0_155 = arith.constant 0 : index
    %c0_156 = arith.constant 0 : index
    %c0_157 = arith.constant 0 : index
    %140 = vector.load %arg9[%c1_154, %c0_155, %c0_156, %c0_157] : memref<2x1x128x128xf32, #tpu.memory_space<vmem>>, vector<1x1x128x128xf32>
    %141 = vector.shape_cast %140 : vector<1x1x128x128xf32> to vector<128x128xf32>
    %cst_158 = arith.constant dense<0.000000e+00> : vector<16x128xf32>
    %142 = tpu.matmul %139, %141, %cst_158 {dimension_numbers = #tpu.dot_dimension_numbers<[1], [0], [0], [1], [0, 0, 1, 1], [], []>} : vector<16x128xf32>, vector<128x128xf32>, vector<16x128xf32> -> vector<16x128xf32>
    %c1_159 = arith.constant 1 : index
    %c0_160 = arith.constant 0 : index
    %c0_161 = arith.constant 0 : index
    %143 = vector.load %arg10[%c1_159, %c0_160, %c0_161] : memref<2x1x128xf32, #tpu.memory_space<vmem>>, vector<1x1x128xf32>
    %144 = vector.shape_cast %143 : vector<1x1x128xf32> to vector<1x128xf32>
    %145 = vector.broadcast %144 : vector<1x128xf32> to vector<16x128xf32>
    %146 = arith.addf %142, %145 : vector<16x128xf32>
    %147 = arith.mulf %127, %146 : vector<16x128xf32>
    %148 = arith.addf %75, %147 : vector<16x128xf32>
    %149 = arith.addf %76, %146 : vector<16x128xf32>
    %cst_162 = arith.constant 2.000000e+00 : f32
    %150 = vector.broadcast %cst_162 : f32 to vector<16x128xf32>
    %151 = arith.mulf %150, %148 : vector<16x128xf32>
    %c0_163 = arith.constant 0 : index
    %c0_164 = arith.constant 0 : index
    %c0_165 = arith.constant 0 : index
    %152 = vector.load %arg11[%c0_163, %c0_164, %c0_165] : memref<1x16x128xf32, #tpu.memory_space<vmem>>, vector<1x16x128xf32>
    %153 = vector.shape_cast %152 : vector<1x16x128xf32> to vector<16x128xf32>
    %154 = vector.shape_cast %151 : vector<16x128xf32> to vector<1x16x128xf32>
    tpu.vector_store %arg11[%c0_163, %c0_164, %c0_165], %154 {strides = array<i32>} : memref<1x16x128xf32, #tpu.memory_space<vmem>>, vector<1x16x128xf32>,
    %cst_166 = arith.constant 2.000000e+00 : f32
    %155 = vector.broadcast %cst_166 : f32 to vector<16x128xf32>
    %156 = arith.mulf %155, %149 : vector<16x128xf32>
    %c0_167 = arith.constant 0 : index
    %c0_168 = arith.constant 0 : index
    %c0_169 = arith.constant 0 : index
    %157 = vector.load %arg12[%c0_167, %c0_168, %c0_169] : memref<1x16x128xf32, #tpu.memory_space<vmem>>, vector<1x16x128xf32>
    %158 = vector.shape_cast %157 : vector<1x16x128xf32> to vector<16x128xf32>
    %159 = vector.shape_cast %156 : vector<16x128xf32> to vector<1x16x128xf32>
    tpu.vector_store %arg12[%c0_167, %c0_168, %c0_169], %159 {strides = array<i32>} : memref<1x16x128xf32, #tpu.memory_space<vmem>>, vector<1x16x128xf32>,
    return
  }
  func.func @transform_0(%arg0: i32) -> (i32, i32, i32) {
    %c0_i32 = arith.constant 0 : i32
    %c0_i32_0 = arith.constant 0 : i32
    %c0_i32_1 = arith.constant 0 : i32
    return %arg0, %c0_i32, %c0_i32_0 : i32, i32, i32
  }
  func.func @transform_1(%arg0: i32) -> (i32, i32, i32) {
    %c0_i32 = arith.constant 0 : i32
    %c0_i32_0 = arith.constant 0 : i32
    %c0_i32_1 = arith.constant 0 : i32
    return %arg0, %c0_i32, %c0_i32_0 : i32, i32, i32
  }
  func.func @transform_2(%arg0: i32) -> (i32, i32, i32, i32) {
    %c0_i32 = arith.constant 0 : i32
    %c0_i32_0 = arith.constant 0 : i32
    %c0_i32_1 = arith.constant 0 : i32
    %c0_i32_2 = arith.constant 0 : i32
    %c0_i32_3 = arith.constant 0 : i32
    return %c0_i32, %c0_i32_0, %c0_i32_1, %c0_i32_2 : i32, i32, i32, i32
  }
  func.func @transform_3(%arg0: i32) -> (i32, i32, i32) {
    %c0_i32 = arith.constant 0 : i32
    %c0_i32_0 = arith.constant 0 : i32
    %c0_i32_1 = arith.constant 0 : i32
    %c0_i32_2 = arith.constant 0 : i32
    return %c0_i32, %c0_i32_0, %c0_i32_1 : i32, i32, i32
  }
  func.func @transform_4(%arg0: i32) -> (i32, i32, i32, i32) {
    %c0_i32 = arith.constant 0 : i32
    %c0_i32_0 = arith.constant 0 : i32
    %c0_i32_1 = arith.constant 0 : i32
    %c0_i32_2 = arith.constant 0 : i32
    %c0_i32_3 = arith.constant 0 : i32
    return %c0_i32, %c0_i32_0, %c0_i32_1, %c0_i32_2 : i32, i32, i32, i32
  }
  func.func @transform_5(%arg0: i32) -> (i32, i32, i32) {
    %c0_i32 = arith.constant 0 : i32
    %c0_i32_0 = arith.constant 0 : i32
    %c0_i32_1 = arith.constant 0 : i32
    %c0_i32_2 = arith.constant 0 : i32
    return %c0_i32, %c0_i32_0, %c0_i32_1 : i32, i32, i32
  }
  func.func @transform_6(%arg0: i32) -> (i32, i32, i32, i32) {
    %c0_i32 = arith.constant 0 : i32
    %c0_i32_0 = arith.constant 0 : i32
    %c0_i32_1 = arith.constant 0 : i32
    %c0_i32_2 = arith.constant 0 : i32
    %c0_i32_3 = arith.constant 0 : i32
    return %c0_i32, %c0_i32_0, %c0_i32_1, %c0_i32_2 : i32, i32, i32, i32
  }
  func.func @transform_7(%arg0: i32) -> (i32, i32, i32) {
    %c0_i32 = arith.constant 0 : i32
    %c0_i32_0 = arith.constant 0 : i32
    %c0_i32_1 = arith.constant 0 : i32
    %c0_i32_2 = arith.constant 0 : i32
    return %c0_i32, %c0_i32_0, %c0_i32_1 : i32, i32, i32
  }
  func.func @transform_8(%arg0: i32) -> (i32, i32, i32, i32) {
    %c0_i32 = arith.constant 0 : i32
    %c0_i32_0 = arith.constant 0 : i32
    %c0_i32_1 = arith.constant 0 : i32
    %c0_i32_2 = arith.constant 0 : i32
    %c0_i32_3 = arith.constant 0 : i32
    return %c0_i32, %c0_i32_0, %c0_i32_1, %c0_i32_2 : i32, i32, i32, i32
  }
  func.func @transform_9(%arg0: i32) -> (i32, i32, i32) {
    %c0_i32 = arith.constant 0 : i32
    %c0_i32_0 = arith.constant 0 : i32
    %c0_i32_1 = arith.constant 0 : i32
    %c0_i32_2 = arith.constant 0 : i32
    return %c0_i32, %c0_i32_0, %c0_i32_1 : i32, i32, i32
  }
  func.func @transform_10(%arg0: i32) -> (i32, i32, i32) {
    %c0_i32 = arith.constant 0 : i32
    %c0_i32_0 = arith.constant 0 : i32
    %c0_i32_1 = arith.constant 0 : i32
    return %arg0, %c0_i32, %c0_i32_0 : i32, i32, i32
  }
  func.func @transform_11(%arg0: i32) -> (i32, i32, i32) {
    %c0_i32 = arith.constant 0 : i32
    %c0_i32_0 = arith.constant 0 : i32
    %c0_i32_1 = arith.constant 0 : i32
    return %arg0, %c0_i32, %c0_i32_0 : i32, i32, i32
  }
}

</mosaic_0001>

<llo_original>
// kernel: tile.37
$region0: #{tile.37}
  #allocation0 [shape = 's32[1]{0}', space=sflag, size = 0x4, scoped, tag = 'scoped memory for tile.37']
  %s0 = inlined_call_operand.vmem [shape: f32[8], index: 0, kind: input, shape index: {}]
  %s1 = inlined_call_operand.vmem [shape: f32[16,8], index: 1, kind: output, shape index: {}]
  // Predicated region
  $region2: #{tile.37} parent=0 // pred_check
    _
  $region3: #{tile.37} parent=0 // pred_check_branch
    %3 = sbr.rel (0) target = $region5
  $region4: #{tile.37} parent=0 // pred_region
    _
  $region5: #{tile.37} parent=0 // pred_fallthru
    _
  %v4 = vld [vmem:[%s0] ss:$0 sm:$0xff]
  %5 = vst [vmem:[%s1] sm:$0xff] %v4
  %s6 = scalar_lea.vmem %s1, 8
  %7 = vst [vmem:[%s6] sm:$0xff] %v4

// kernel: tile.39
$region0: #{tile.39}
  %s0 = inlined_call_operand.vmem [shape: f32[16,8], index: 0, kind: input, shape index: {}]
  %s1 = inlined_call_operand.vmem [shape: f32[1,1,128], index: 1, kind: output, shape index: {}]
  $region1: #{tile.39} parent=0
    #allocation0 [shape = 'u8[4096]{0}', space=vmem, size = 0x1000, scoped, tag = 'scoped mem for output reshape']
    %v2 = vld [vmem:[%s0] sm:$0x1]
    %vm3 = vcmask 64512
    %4 = vst.msk [vmem:[#allocation0] sm:$0x1] %vm3, %v2
    %s5 = scalar_lea.vmem %s0, 15
    %v6 = vld [vmem:[%s5] sm:$0x1]
    %7 = vrot.lane.b32.xlu0 %v6, 120
    %v8 = vpop.permute.xlu0 %7
    %vm9 = vcmask 1048512
    %10 = vst.msk [vmem:[#allocation0] sm:$0x1] %vm9, %v8
    %s11 = scalar_lea.vmem %s0, 14
    %v12 = vld [vmem:[%s11] sm:$0x1]
    %13 = vrot.lane.b32.xlu0 %v12, 112
    %v14 = vpop.permute.xlu0 %13
    %vm15 = vcmask 982912
    %16 = vst.msk [vmem:[#allocation0] sm:$0x1] %vm15, %v14
    %s17 = scalar_lea.vmem %s0, 13
    %v18 = vld [vmem:[%s17] sm:$0x1]
    %19 = vrot.lane.b32.xlu0 %v18, 104
    %v20 = vpop.permute.xlu0 %19
    %vm21 = vcmask 917312
    %22 = vst.msk [vmem:[#allocation0] sm:$0x1] %vm21, %v20
    %s23 = scalar_lea.vmem %s0, 12
    %v24 = vld [vmem:[%s23] sm:$0x1]
    %25 = vrot.lane.b32.xlu0 %v24, 96
    %v26 = vpop.permute.xlu0 %25
    %vm27 = vcmask 851712
    %28 = vst.msk [vmem:[#allocation0] sm:$0x1] %vm27, %v26
    %s29 = scalar_lea.vmem %s0, 11
    %v30 = vld [vmem:[%s29] sm:$0x1]
    %31 = vrot.lane.b32.xlu0 %v30, 88
    %v32 = vpop.permute.xlu0 %31
    %vm33 = vcmask 786112
    %34 = vst.msk [vmem:[#allocation0] sm:$0x1] %vm33, %v32
    %s35 = scalar_lea.vmem %s0, 10
    %v36 = vld [vmem:[%s35] sm:$0x1]
    %37 = vrot.lane.b32.xlu0 %v36, 80
    %v38 = vpop.permute.xlu0 %37
    %vm39 = vcmask 720512
    %40 = vst.msk [vmem:[#allocation0] sm:$0x1] %vm39, %v38
    %s41 = scalar_lea.vmem %s0, 9
    %v42 = vld [vmem:[%s41] sm:$0x1]
    %43 = vrot.lane.b32.xlu0 %v42, 72
    %v44 = vpop.permute.xlu0 %43
    %vm45 = vcmask 654912
    %46 = vst.msk [vmem:[#allocation0] sm:$0x1] %vm45, %v44
    %s47 = scalar_lea.vmem %s0, 8
    %v48 = vld [vmem:[%s47] sm:$0x1]
    %49 = vrot.lane.b32.xlu0 %v48, 64
    %v50 = vpop.permute.xlu0 %49
    %vm51 = vcmask 589312
    %52 = vst.msk [vmem:[#allocation0] sm:$0x1] %vm51, %v50
    %s53 = scalar_lea.vmem %s0, 7
    %v54 = vld [vmem:[%s53] sm:$0x1]
    %55 = vrot.lane.b32.xlu0 %v54, 56
    %v56 = vpop.permute.xlu0 %55
    %vm57 = vcmask 523712
    %58 = vst.msk [vmem:[#allocation0] sm:$0x1] %vm57, %v56
    %s59 = scalar_lea.vmem %s0, 6
    %v60 = vld [vmem:[%s59] sm:$0x1]
    %61 = vrot.lane.b32.xlu0 %v60, 48
    %v62 = vpop.permute.xlu0 %61
    %vm63 = vcmask 458112
    %64 = vst.msk [vmem:[#allocation0] sm:$0x1] %vm63, %v62
    %s65 = scalar_lea.vmem %s0, 5
    %v66 = vld [vmem:[%s65] sm:$0x1]
    %67 = vrot.lane.b32.xlu0 %v66, 40
    %v68 = vpop.permute.xlu0 %67
    %vm69 = vcmask 392512
    %70 = vst.msk [vmem:[#allocation0] sm:$0x1] %vm69, %v68
    %s71 = scalar_lea.vmem %s0, 4
    %v72 = vld [vmem:[%s71] sm:$0x1]
    %73 = vrot.lane.b32.xlu0 %v72, 32
    %v74 = vpop.permute.xlu0 %73
    %vm75 = vcmask 326912
    %76 = vst.msk [vmem:[#allocation0] sm:$0x1] %vm75, %v74
    %s77 = scalar_lea.vmem %s0, 3
    %v78 = vld [vmem:[%s77] sm:$0x1]
    %79 = vrot.lane.b32.xlu0 %v78, 24
    %v80 = vpop.permute.xlu0 %79
    %vm81 = vcmask 261312
    %82 = vst.msk [vmem:[#allocation0] sm:$0x1] %vm81, %v80
    %s83 = scalar_lea.vmem %s0, 2
    %v84 = vld [vmem:[%s83] sm:$0x1]
    %85 = vrot.lane.b32.xlu0 %v84, 16
    %v86 = vpop.permute.xlu0 %85
    %vm87 = vcmask 195712
    %88 = vst.msk [vmem:[#allocation0] sm:$0x1] %vm87, %v86
    %s89 = scalar_lea.vmem %s0, 1
    %v90 = vld [vmem:[%s89] sm:$0x1]
    %91 = vrot.lane.b32.xlu0 %v90, 8
    %v92 = vpop.permute.xlu0 %91
    %vm93 = vcmask 130112
    %94 = vst.msk [vmem:[#allocation0] sm:$0x1] %vm93, %v92
    %s96 = sshll.u32 1, 1
    %s97 = ssub.s32 %s96, 1
    %v99 = vld [vmem:[#allocation0] sm:%s97]
    %s100 = sshll.u32 1, 1
    %s101 = ssub.s32 %s100, 1
    %102 = vst [vmem:[%s1] sm:%s101] %v99

// kernel: _lambda_.1
$region0: #{_lambda_.1}
  #allocation0 [shape = 'u32[]', space=smem, size = 0x4, offset = 0x4, fixed_abs, tag = 'smem constant byte address 0x4 - core index']
  #allocation1 [shape = 'u32[144,128]{1,0:T(1,128)}', space=vmem, size = 0x12000, scoped, tag = 'internal scratch']
  #allocation2 [shape = 'f32[18,128]{1,0:T(8,128)}', space=vmem, size = 0x3000, scoped, tag = 'scratch operand']
  %s0 = inlined_call_operand.vmem [shape: f32[2,16,128], index: 0, kind: input, shape index: {}]
  %s1 = inlined_call_operand.vmem [shape: f32[2,16,128], index: 1, kind: input, shape index: {}]
  %s2 = inlined_call_operand.vmem [shape: f32[2,3,128,128], index: 2, kind: input, shape index: {}]
  %s3 = inlined_call_operand.vmem [shape: f32[2,1,128], index: 3, kind: input, shape index: {}]
  %s4 = inlined_call_operand.vmem [shape: f32[2,3,128,128], index: 4, kind: input, shape index: {}]
  %s5 = inlined_call_operand.vmem [shape: f32[2,1,128], index: 5, kind: input, shape index: {}]
  %s6 = inlined_call_operand.vmem [shape: f32[2,1,128,128], index: 6, kind: input, shape index: {}]
  %s7 = inlined_call_operand.vmem [shape: f32[2,1,128], index: 7, kind: input, shape index: {}]
  %s8 = inlined_call_operand.vmem [shape: f32[2,1,128,128], index: 8, kind: input, shape index: {}]
  %s9 = inlined_call_operand.vmem [shape: f32[2,1,128], index: 9, kind: input, shape index: {}]
  %s10 = inlined_call_operand.vmem [shape: f32[2,16,128], index: 10, kind: output, shape index: {0}]
  %s11 = inlined_call_operand.vmem [shape: f32[2,16,128], index: 11, kind: output, shape index: {1}]
  %12 = xla_tuple %s10, %s11
  %s13 = sld [smem:[#allocation0]]
  $region81: #{_lambda_.1} parent=0
    _
  %s15 = ssub.s32 1, %s13
  %s16 = scalar_select 0, %s15, %s13
  loop: start=0, step=1, limit=4
  $region2: #{_lambda_.1} parent=0 // loop_pre_header
    _
  $region3: #{_lambda_.1} parent=0 // loop_header
    %s18 = sphi 0, %s22
    %p19 = scmp.ge.s32.totalorder %s18, 4
    %s28 = sphi 0, %s30
    %s31 = sphi 0, %s28
    %s32 = sphi 0, %s31
    %s48 = sphi 0, %s32
    %s54 = sphi 0, %s56
    %s57 = sphi 0, %s54
    %s58 = sphi 0, %s57
    %s74 = sphi 0, %s58
    %s78 = sphi 0, %s78
    %s80 = sphi 0, %s78
    %s81 = sphi 0, %s80
    %s95 = sphi 0, %s81
    %s99 = sphi 0, %s99
    %s101 = sphi 0, %s99
    %s102 = sphi 0, %s101
    %s116 = sphi 0, %s102
    %s120 = sphi 0, %s120
    %s122 = sphi 0, %s120
    %s123 = sphi 0, %s122
    %s137 = sphi 0, %s123
    %s141 = sphi 0, %s141
    %s143 = sphi 0, %s141
    %s144 = sphi 0, %s143
    %s158 = sphi 0, %s144
    %s162 = sphi 0, %s162
    %s164 = sphi 0, %s162
    %s165 = sphi 0, %s164
    %s179 = sphi 0, %s165
    %s183 = sphi 0, %s183
    %s185 = sphi 0, %s183
    %s186 = sphi 0, %s185
    %s200 = sphi 0, %s186
    %s204 = sphi 0, %s204
    %s206 = sphi 0, %s204
    %s207 = sphi 0, %s206
    %s221 = sphi 0, %s207
    %s225 = sphi 0, %s225
    %s227 = sphi 0, %s225
    %s228 = sphi 0, %s227
    %s242 = sphi 0, %s228
    %s248 = sphi 0, %s250
    %s251 = sphi 0, %s248
    %s252 = sphi 0, %s251
    %s268 = sphi 0, %s252
    %s274 = sphi 0, %s276
    %s277 = sphi 0, %s274
    %s278 = sphi 0, %s277
    %s294 = sphi 0, %s278
  $region4: #{_lambda_.1} parent=0 // loop_header_branch
    %21 = sbr.rel (%p19) target = $region8
  $region5: #{_lambda_.1} parent=0 // loop_body
    %s23 = ssub.s32 %s18, 1
    %s24 = ssub.s32 %s18, 2
    %s25 = sadd.s32 %s18, 1
    %s26 = ssub.s32 %s18, %s25
    %p27 = scmp.eq.s32.totalorder %s26, 0
    %s29 = sadd.s32 %s28, 1
    %s30 = scalar_select %p27, %s28, %s29
    %p33 = pneg %p27
    %p34 = scmp.eq.s32.totalorder %s18, 1
    %p35 = por %p33, %p34
    %p36 = scmp.ne.s32.totalorder %s28, %s31
    %p37 = scmp.eq.s32.totalorder %s18, 0
    %p38 = por %p36, %p37
    %p39 = scmp.ne.s32.totalorder %s28, %s31
    %p40 = scmp.eq.s32.totalorder %s23, 1
    %p41 = por %p39, %p40
    %p42 = scmp.ne.s32.totalorder %s31, %s32
    %p43 = scmp.eq.s32.totalorder %s23, 0
    %p44 = por %p42, %p43
    %p45 = scmp.ne.s32.totalorder %s31, %s32
    %p46 = scmp.eq.s32.totalorder %s24, 1
    %p47 = por %p45, %p46
    %p49 = scmp.ne.s32.totalorder %s32, %s48
    %p50 = scmp.eq.s32.totalorder %s24, 0
    %p51 = por %p49, %p50
    %s52 = ssub.s32 %s18, %s25
    %p53 = scmp.eq.s32.totalorder %s52, 0
    %s55 = sadd.s32 %s54, 1
    %s56 = scalar_select %p53, %s54, %s55
    %p59 = pneg %p53
    %p60 = scmp.eq.s32.totalorder %s18, 1
    %p61 = por %p59, %p60
    %p62 = scmp.ne.s32.totalorder %s54, %s57
    %p63 = scmp.eq.s32.totalorder %s18, 0
    %p64 = por %p62, %p63
    %p65 = scmp.ne.s32.totalorder %s54, %s57
    %p66 = scmp.eq.s32.totalorder %s23, 1
    %p67 = por %p65, %p66
    %p68 = scmp.ne.s32.totalorder %s57, %s58
    %p69 = scmp.eq.s32.totalorder %s23, 0
    %p70 = por %p68, %p69
    %p71 = scmp.ne.s32.totalorder %s57, %s58
    %p72 = scmp.eq.s32.totalorder %s24, 1
    %p73 = por %p71, %p72
    %p75 = scmp.ne.s32.totalorder %s58, %s74
    %p76 = scmp.eq.s32.totalorder %s24, 0
    %p77 = por %p75, %p76
    %s79 = sadd.s32 %s78, 1
    %p82 = scmp.eq.s32.totalorder %s18, 1
    %p83 = scmp.ne.s32.totalorder %s78, %s80
    %p84 = scmp.eq.s32.totalorder %s18, 0
    %p85 = por %p83, %p84
    %p86 = scmp.ne.s32.totalorder %s78, %s80
    %p87 = scmp.eq.s32.totalorder %s23, 1
    %p88 = por %p86, %p87
    %p89 = scmp.ne.s32.totalorder %s80, %s81
    %p90 = scmp.eq.s32.totalorder %s23, 0
    %p91 = por %p89, %p90
    %p92 = scmp.ne.s32.totalorder %s80, %s81
    %p93 = scmp.eq.s32.totalorder %s24, 1
    %p94 = por %p92, %p93
    %p96 = scmp.ne.s32.totalorder %s81, %s95
    %p97 = scmp.eq.s32.totalorder %s24, 0
    %p98 = por %p96, %p97
    %s100 = sadd.s32 %s99, 1
    %p103 = scmp.eq.s32.totalorder %s18, 1
    %p104 = scmp.ne.s32.totalorder %s99, %s101
    %p105 = scmp.eq.s32.totalorder %s18, 0
    %p106 = por %p104, %p105
    %p107 = scmp.ne.s32.totalorder %s99, %s101
    %p108 = scmp.eq.s32.totalorder %s23, 1
    %p109 = por %p107, %p108
    %p110 = scmp.ne.s32.totalorder %s101, %s102
    %p111 = scmp.eq.s32.totalorder %s23, 0
    %p112 = por %p110, %p111
    %p113 = scmp.ne.s32.totalorder %s101, %s102
    %p114 = scmp.eq.s32.totalorder %s24, 1
    %p115 = por %p113, %p114
    %p117 = scmp.ne.s32.totalorder %s102, %s116
    %p118 = scmp.eq.s32.totalorder %s24, 0
    %p119 = por %p117, %p118
    %s121 = sadd.s32 %s120, 1
    %p124 = scmp.eq.s32.totalorder %s18, 1
    %p125 = scmp.ne.s32.totalorder %s120, %s122
    %p126 = scmp.eq.s32.totalorder %s18, 0
    %p127 = por %p125, %p126
    %p128 = scmp.ne.s32.totalorder %s120, %s122
    %p129 = scmp.eq.s32.totalorder %s23, 1
    %p130 = por %p128, %p129
    %p131 = scmp.ne.s32.totalorder %s122, %s123
    %p132 = scmp.eq.s32.totalorder %s23, 0
    %p133 = por %p131, %p132
    %p134 = scmp.ne.s32.totalorder %s122, %s123
    %p135 = scmp.eq.s32.totalorder %s24, 1
    %p136 = por %p134, %p135
    %p138 = scmp.ne.s32.totalorder %s123, %s137
    %p139 = scmp.eq.s32.totalorder %s24, 0
    %p140 = por %p138, %p139
    %s142 = sadd.s32 %s141, 1
    %p145 = scmp.eq.s32.totalorder %s18, 1
    %p146 = scmp.ne.s32.totalorder %s141, %s143
    %p147 = scmp.eq.s32.totalorder %s18, 0
    %p148 = por %p146, %p147
    %p149 = scmp.ne.s32.totalorder %s141, %s143
    %p150 = scmp.eq.s32.totalorder %s23, 1
    %p151 = por %p149, %p150
    %p152 = scmp.ne.s32.totalorder %s143, %s144
    %p153 = scmp.eq.s32.totalorder %s23, 0
    %p154 = por %p152, %p153
    %p155 = scmp.ne.s32.totalorder %s143, %s144
    %p156 = scmp.eq.s32.totalorder %s24, 1
    %p157 = por %p155, %p156
    %p159 = scmp.ne.s32.totalorder %s144, %s158
    %p160 = scmp.eq.s32.totalorder %s24, 0
    %p161 = por %p159, %p160
    %s163 = sadd.s32 %s162, 1
    %p166 = scmp.eq.s32.totalorder %s18, 1
    %p167 = scmp.ne.s32.totalorder %s162, %s164
    %p168 = scmp.eq.s32.totalorder %s18, 0
    %p169 = por %p167, %p168
    %p170 = scmp.ne.s32.totalorder %s162, %s164
    %p171 = scmp.eq.s32.totalorder %s23, 1
    %p172 = por %p170, %p171
    %p173 = scmp.ne.s32.totalorder %s164, %s165
    %p174 = scmp.eq.s32.totalorder %s23, 0
    %p175 = por %p173, %p174
    %p176 = scmp.ne.s32.totalorder %s164, %s165
    %p177 = scmp.eq.s32.totalorder %s24, 1
    %p178 = por %p176, %p177
    %p180 = scmp.ne.s32.totalorder %s165, %s179
    %p181 = scmp.eq.s32.totalorder %s24, 0
    %p182 = por %p180, %p181
    %s184 = sadd.s32 %s183, 1
    %p187 = scmp.eq.s32.totalorder %s18, 1
    %p188 = scmp.ne.s32.totalorder %s183, %s185
    %p189 = scmp.eq.s32.totalorder %s18, 0
    %p190 = por %p188, %p189
    %p191 = scmp.ne.s32.totalorder %s183, %s185
    %p192 = scmp.eq.s32.totalorder %s23, 1
    %p193 = por %p191, %p192
    %p194 = scmp.ne.s32.totalorder %s185, %s186
    %p195 = scmp.eq.s32.totalorder %s23, 0
    %p196 = por %p194, %p195
    %p197 = scmp.ne.s32.totalorder %s185, %s186
    %p198 = scmp.eq.s32.totalorder %s24, 1
    %p199 = por %p197, %p198
    %p201 = scmp.ne.s32.totalorder %s186, %s200
    %p202 = scmp.eq.s32.totalorder %s24, 0
    %p203 = por %p201, %p202
    %s205 = sadd.s32 %s204, 1
    %p208 = scmp.eq.s32.totalorder %s18, 1
    %p209 = scmp.ne.s32.totalorder %s204, %s206
    %p210 = scmp.eq.s32.totalorder %s18, 0
    %p211 = por %p209, %p210
    %p212 = scmp.ne.s32.totalorder %s204, %s206
    %p213 = scmp.eq.s32.totalorder %s23, 1
    %p214 = por %p212, %p213
    %p215 = scmp.ne.s32.totalorder %s206, %s207
    %p216 = scmp.eq.s32.totalorder %s23, 0
    %p217 = por %p215, %p216
    %p218 = scmp.ne.s32.totalorder %s206, %s207
    %p219 = scmp.eq.s32.totalorder %s24, 1
    %p220 = por %p218, %p219
    %p222 = scmp.ne.s32.totalorder %s207, %s221
    %p223 = scmp.eq.s32.totalorder %s24, 0
    %p224 = por %p222, %p223
    %s226 = sadd.s32 %s225, 1
    %p229 = scmp.eq.s32.totalorder %s18, 1
    %p230 = scmp.ne.s32.totalorder %s225, %s227
    %p231 = scmp.eq.s32.totalorder %s18, 0
    %p232 = por %p230, %p231
    %p233 = scmp.ne.s32.totalorder %s225, %s227
    %p234 = scmp.eq.s32.totalorder %s23, 1
    %p235 = por %p233, %p234
    %p236 = scmp.ne.s32.totalorder %s227, %s228
    %p237 = scmp.eq.s32.totalorder %s23, 0
    %p238 = por %p236, %p237
    %p239 = scmp.ne.s32.totalorder %s227, %s228
    %p240 = scmp.eq.s32.totalorder %s24, 1
    %p241 = por %p239, %p240
    %p243 = scmp.ne.s32.totalorder %s228, %s242
    %p244 = scmp.eq.s32.totalorder %s24, 0
    %p245 = por %p243, %p244
    %s246 = ssub.s32 %s18, %s25
    %p247 = scmp.eq.s32.totalorder %s246, 0
    %s249 = sadd.s32 %s248, 1
    %s250 = scalar_select %p247, %s248, %s249
    %p253 = pneg %p247
    %p254 = scmp.eq.s32.totalorder %s18, 1
    %p255 = por %p253, %p254
    %p256 = scmp.ne.s32.totalorder %s248, %s251
    %p257 = scmp.eq.s32.totalorder %s18, 0
    %p258 = por %p256, %p257
    %p259 = scmp.ne.s32.totalorder %s248, %s251
    %p260 = scmp.eq.s32.totalorder %s23, 1
    %p261 = por %p259, %p260
    %p262 = scmp.ne.s32.totalorder %s251, %s252
    %p263 = scmp.eq.s32.totalorder %s23, 0
    %p264 = por %p262, %p263
    %p265 = scmp.ne.s32.totalorder %s251, %s252
    %p266 = scmp.eq.s32.totalorder %s24, 1
    %p267 = por %p265, %p266
    %p269 = scmp.ne.s32.totalorder %s252, %s268
    %p270 = scmp.eq.s32.totalorder %s24, 0
    %p271 = por %p269, %p270
    %s272 = ssub.s32 %s18, %s25
    %p273 = scmp.eq.s32.totalorder %s272, 0
    %s275 = sadd.s32 %s274, 1
    %s276 = scalar_select %p273, %s274, %s275
    %p279 = pneg %p273
    %p280 = scmp.eq.s32.totalorder %s18, 1
    %p281 = por %p279, %p280
    %p282 = scmp.ne.s32.totalorder %s274, %s277
    %p283 = scmp.eq.s32.totalorder %s18, 0
    %p284 = por %p282, %p283
    %p285 = scmp.ne.s32.totalorder %s274, %s277
    %p286 = scmp.eq.s32.totalorder %s23, 1
    %p287 = por %p285, %p286
    %p288 = scmp.ne.s32.totalorder %s277, %s278
    %p289 = scmp.eq.s32.totalorder %s23, 0
    %p290 = por %p288, %p289
    %p291 = scmp.ne.s32.totalorder %s277, %s278
    %p292 = scmp.eq.s32.totalorder %s24, 1
    %p293 = por %p291, %p292
    %p295 = scmp.ne.s32.totalorder %s278, %s294
    %p296 = scmp.eq.s32.totalorder %s24, 0
    %p297 = por %p295, %p296
    %p298 = scmp.le.s32.totalorder 1, %s18
    %p299 = scmp.lt.s32.totalorder %s18, 3
    %p300 = pnand %p298, %p299
    %p301 = pneg %p300
    // Predicated region
    $region9: #{_lambda_.1} parent=5 // pred_check
      _
    $region10: #{_lambda_.1} parent=5 // pred_check_branch
      %303 = sbr.rel (%p300) target = $region12
    $region11: #{_lambda_.1} parent=5 // pred_region
      %s304 = ssub.s32 %s18, 1
      // Predicated region
      $region13: #{_lambda_.1} parent=11 // pred_check
        %p305 = pneg %p91
      $region14: #{_lambda_.1} parent=11 // pred_check_branch
        %307 = sbr.rel (%p305) target = $region16
      $region15: #{_lambda_.1} parent=11 // pred_region
        _
      $region16: #{_lambda_.1} parent=11 // pred_fallthru
        _
      // Predicated region
      $region17: #{_lambda_.1} parent=11 // pred_check
        %p308 = pneg %p112
      $region18: #{_lambda_.1} parent=11 // pred_check_branch
        %310 = sbr.rel (%p308) target = $region20
      $region19: #{_lambda_.1} parent=11 // pred_region
        _
      $region20: #{_lambda_.1} parent=11 // pred_fallthru
        _
      // Predicated region
      $region21: #{_lambda_.1} parent=11 // pred_check
        %p311 = pneg %p133
      $region22: #{_lambda_.1} parent=11 // pred_check_branch
        %313 = sbr.rel (%p311) target = $region24
      $region23: #{_lambda_.1} parent=11 // pred_region
        _
      $region24: #{_lambda_.1} parent=11 // pred_fallthru
        _
      // Predicated region
      $region25: #{_lambda_.1} parent=11 // pred_check
        %p314 = pneg %p154
      $region26: #{_lambda_.1} parent=11 // pred_check_branch
        %316 = sbr.rel (%p314) target = $region28
      $region27: #{_lambda_.1} parent=11 // pred_region
        _
      $region28: #{_lambda_.1} parent=11 // pred_fallthru
        _
      // Predicated region
      $region29: #{_lambda_.1} parent=11 // pred_check
        %p317 = pneg %p175
      $region30: #{_lambda_.1} parent=11 // pred_check_branch
        %319 = sbr.rel (%p317) target = $region32
      $region31: #{_lambda_.1} parent=11 // pred_region
        _
      $region32: #{_lambda_.1} parent=11 // pred_fallthru
        _
      // Predicated region
      $region33: #{_lambda_.1} parent=11 // pred_check
        %p320 = pneg %p196
      $region34: #{_lambda_.1} parent=11 // pred_check_branch
        %322 = sbr.rel (%p320) target = $region36
      $region35: #{_lambda_.1} parent=11 // pred_region
        _
      $region36: #{_lambda_.1} parent=11 // pred_fallthru
        _
      // Predicated region
      $region37: #{_lambda_.1} parent=11 // pred_check
        %p323 = pneg %p217
      $region38: #{_lambda_.1} parent=11 // pred_check_branch
        %325 = sbr.rel (%p323) target = $region40
      $region39: #{_lambda_.1} parent=11 // pred_region
        _
      $region40: #{_lambda_.1} parent=11 // pred_fallthru
        _
      // Predicated region
      $region41: #{_lambda_.1} parent=11 // pred_check
        %p326 = pneg %p238
      $region42: #{_lambda_.1} parent=11 // pred_check_branch
        %328 = sbr.rel (%p326) target = $region44
      $region43: #{_lambda_.1} parent=11 // pred_region
        _
      $region44: #{_lambda_.1} parent=11 // pred_fallthru
        _
    $region12: #{_lambda_.1} parent=5 // pred_fallthru
      _
    %p329 = scmp.lt.s32.totalorder %s18, 2
    // Predicated region
    $region45: #{_lambda_.1} parent=5 // pred_check
      %p330 = pneg %p329
    $region46: #{_lambda_.1} parent=5 // pred_check_branch
      %332 = sbr.rel (%p330) target = $region48
    $region47: #{_lambda_.1} parent=5 // pred_region
      // Predicated region
      $region49: #{_lambda_.1} parent=47 // pred_check
        %p333 = pneg %p38
      $region50: #{_lambda_.1} parent=47 // pred_check_branch
        %335 = sbr.rel (%p333) target = $region52
      $region51: #{_lambda_.1} parent=47 // pred_region
        %p336 = scmp.lt.s32.totalorder %s18, 1
        %s337 = scalar_select %p336, %s18, 1
        %s338 = smul.addr %s337, 2
        %s339 = smul.addr %s338, 8
        %s340 = scalar_lea.vmem %s0, %s339
      $region52: #{_lambda_.1} parent=47 // pred_fallthru
        _
      // Predicated region
      $region53: #{_lambda_.1} parent=47 // pred_check
        %p341 = pneg %p64
      $region54: #{_lambda_.1} parent=47 // pred_check_branch
        %343 = sbr.rel (%p341) target = $region56
      $region55: #{_lambda_.1} parent=47 // pred_region
        %p344 = scmp.lt.s32.totalorder %s18, 1
        %s345 = scalar_select %p344, %s18, 1
        %s346 = smul.addr %s345, 2
        %s347 = smul.addr %s346, 8
        %s348 = scalar_lea.vmem %s1, %s347
      $region56: #{_lambda_.1} parent=47 // pred_fallthru
        _
    $region48: #{_lambda_.1} parent=5 // pred_fallthru
      _
    %p349 = scmp.le.s32.totalorder 1, %s18
    %p350 = scmp.lt.s32.totalorder %s18, 3
    %p351 = pnand %p349, %p350
    %p352 = pneg %p351
    // Predicated region
    $region57: #{_lambda_.1} parent=5 // pred_check
      _
    $region58: #{_lambda_.1} parent=5 // pred_check_branch
      %354 = sbr.rel (%p351) target = $region60
    $region59: #{_lambda_.1} parent=5 // pred_region
      %s355 = ssub.s32 %s18, 1
      %p356 = scmp.lt.s32.totalorder %s23, 1
      %s357 = scalar_select %p356, %s23, 1
      %s358 = smul.addr %s357, 2
      %s359 = smul.addr %s358, 8
      %s360 = scalar_lea.vmem %s0, %s359
      %p361 = pneg %p44
      %p362 = pneg %p41
      %p363 = scmp.lt.s32.totalorder %s23, 1
      %s364 = scalar_select %p363, %s23, 1
      %s365 = smul.addr %s364, 2
      %s366 = smul.addr %s365, 8
      %s367 = scalar_lea.vmem %s1, %s366
      %p368 = pneg %p70
      %p369 = pneg %p67
      %p370 = pneg %p91
      %p371 = pneg %p88
      %p372 = pneg %p112
      %p373 = pneg %p109
      %p374 = pneg %p133
      %p375 = pneg %p130
      %p376 = pneg %p154
      %p377 = pneg %p151
      %p378 = pneg %p175
      %p379 = pneg %p172
      %p380 = pneg %p196
      %p381 = pneg %p193
      %p382 = pneg %p217
      %p383 = pneg %p214
      %p384 = pneg %p238
      %p385 = pneg %p235
      %p386 = pneg %p264
      %p387 = pneg %p261
      %p388 = scmp.lt.s32.totalorder %s23, 1
      %s389 = scalar_select %p388, %s23, 1
      %s390 = smul.addr %s389, 2
      %s391 = smul.addr %s390, 8
      %s392 = scalar_lea.vmem %s10, %s391
      %p393 = pneg %p290
      %p394 = pneg %p287
      %p395 = scmp.lt.s32.totalorder %s23, 1
      %s396 = scalar_select %p395, %s23, 1
      %s397 = smul.addr %s396, 2
      %s398 = smul.addr %s397, 8
      %s399 = scalar_lea.vmem %s11, %s398
      %p400 = scmp.lt.s32.totalorder %s23, 1
      %s401 = scalar_select %p400, %s23, 1
      %s402 = smul.addr %s401, 2
      %s403 = smul.addr %s402, 8
      %s404 = scalar_lea.vmem %s0, %s403
      %p405 = scmp.lt.s32.totalorder %s23, 1
      %s406 = scalar_select %p405, %s23, 1
      %s407 = smul.addr %s406, 2
      %s408 = smul.addr %s407, 8
      %s409 = scalar_lea.vmem %s1, %s408
      %p410 = scmp.lt.s32.totalorder %s23, 1
      %s411 = scalar_select %p410, %s23, 1
      %s412 = smul.addr %s411, 2
      %s413 = smul.addr %s412, 8
      %s414 = scalar_lea.vmem %s10, %s413
      %p415 = scmp.lt.s32.totalorder %s23, 1
      %s416 = scalar_select %p415, %s23, 1
      %s417 = smul.addr %s416, 2
      %s418 = smul.addr %s417, 8
      %s419 = scalar_lea.vmem %s11, %s418
      %v420 = vld [vmem:[%s404] sm:$0xff]
      %v421 = vld [vmem:[%s404 + $0x8] sm:$0xff]
      %v422 = vld [vmem:[%s409] sm:$0xff]
      %v423 = vld [vmem:[%s409 + $0x8] sm:$0xff]
      %424 = vst [vmem:[#allocation2] sm:$0xff] 0.0
      %425 = vst [vmem:[#allocation2 + $0x8] sm:$0xff] 0.0
      %426 = vst [vmem:[#allocation2 + $0x10] sm:$0x3] 0.0
      %427 = vst [vmem:[#allocation2 + $0x1] sm:$0xff] %v420
      %428 = vst [vmem:[#allocation2 + $0x9] sm:$0xff] %v421
      %v429 = vld [vmem:[#allocation2] sm:$0xff]
      %v430 = vld [vmem:[#allocation2 + $0x8] sm:$0xff]
      %v431 = vld [vmem:[%s2] sm:$0xff]
      %v432 = vld [vmem:[%s2 + $0x8] sm:$0xff]
      %v433 = vld [vmem:[%s2 + $0x10] sm:$0xff]
      %v434 = vld [vmem:[%s2 + $0x18] sm:$0xff]
      %v435 = vld [vmem:[%s2 + $0x20] sm:$0xff]
      %v436 = vld [vmem:[%s2 + $0x28] sm:$0xff]
      %v437 = vld [vmem:[%s2 + $0x30] sm:$0xff]
      %v438 = vld [vmem:[%s2 + $0x38] sm:$0xff]
      %v439 = vld [vmem:[%s2 + $0x40] sm:$0xff]
      %v440 = vld [vmem:[%s2 + $0x48] sm:$0xff]
      %v441 = vld [vmem:[%s2 + $0x50] sm:$0xff]
      %v442 = vld [vmem:[%s2 + $0x58] sm:$0xff]
      %v443 = vld [vmem:[%s2 + $0x60] sm:$0xff]
      %v444 = vld [vmem:[%s2 + $0x68] sm:$0xff]
      %v445 = vld [vmem:[%s2 + $0x70] sm:$0xff]
      %v446 = vld [vmem:[%s2 + $0x78] sm:$0xff]
      %v447 = vld [vmem:[#allocation2 + $0x1] sm:$0xff]
      %v448 = vld [vmem:[#allocation2 + $0x9] sm:$0xff]
      %s449 = scalar_lea.vmem %s2, 128
      %v450 = vld [vmem:[%s449] sm:$0xff]
      %v451 = vld [vmem:[%s449 + $0x8] sm:$0xff]
      %v452 = vld [vmem:[%s449 + $0x10] sm:$0xff]
      %v453 = vld [vmem:[%s449 + $0x18] sm:$0xff]
      %v454 = vld [vmem:[%s449 + $0x20] sm:$0xff]
      %v455 = vld [vmem:[%s449 + $0x28] sm:$0xff]
      %v456 = vld [vmem:[%s449 + $0x30] sm:$0xff]
      %v457 = vld [vmem:[%s449 + $0x38] sm:$0xff]
      %v458 = vld [vmem:[%s449 + $0x40] sm:$0xff]
      %v459 = vld [vmem:[%s449 + $0x48] sm:$0xff]
      %v460 = vld [vmem:[%s449 + $0x50] sm:$0xff]
      %v461 = vld [vmem:[%s449 + $0x58] sm:$0xff]
      %v462 = vld [vmem:[%s449 + $0x60] sm:$0xff]
      %v463 = vld [vmem:[%s449 + $0x68] sm:$0xff]
      %v464 = vld [vmem:[%s449 + $0x70] sm:$0xff]
      %v465 = vld [vmem:[%s449 + $0x78] sm:$0xff]
      %466 = vmatprep.subr.mxu0 0.0
      %467 = vmatpush1.msra.mxu0 %v465
      %468 = vmatprep.subr.mxu0 0.0
      %469 = vmatpush1.msra.mxu0 %v464
      %470 = vmatprep.subr.mxu0 0.0
      %471 = vmatpush1.msra.mxu0 %v463
      %472 = vmatprep.subr.mxu0 0.0
      %473 = vmatpush1.msra.mxu0 %v462
      %474 = vmatprep.subr.mxu0 0.0
      %475 = vmatpush1.msra.mxu0 %v461
      %476 = vmatprep.subr.mxu0 0.0
      %477 = vmatpush1.msra.mxu0 %v460
      %478 = vmatprep.subr.mxu0 0.0
      %479 = vmatpush1.msra.mxu0 %v459
      %480 = vmatprep.subr.mxu0 0.0
      %481 = vmatpush1.msra.mxu0 %v458
      %482 = vmatprep.subr.mxu0 0.0
      %483 = vmatpush1.msra.mxu0 %v457
      %484 = vmatprep.subr.mxu0 0.0
      %485 = vmatpush1.msra.mxu0 %v456
      %486 = vmatprep.subr.mxu0 0.0
      %487 = vmatpush1.msra.mxu0 %v455
      %488 = vmatprep.subr.mxu0 0.0
      %489 = vmatpush1.msra.mxu0 %v454
      %490 = vmatprep.subr.mxu0 0.0
      %491 = vmatpush1.msra.mxu0 %v453
      %492 = vmatprep.subr.mxu0 0.0
      %493 = vmatpush1.msra.mxu0 %v452
      %494 = vmatprep.subr.mxu0 0.0
      %495 = vmatpush1.msra.mxu0 %v451
      %496 = vmatprep.subr.mxu0 0.0
      %497 = vmatpush1.msra.mxu0 %v450
      %498 = vmatprep.subr.mxu0 0.0
      %499 = vmatpush2.msra.mxu0 0.0
      %500 = vmatprep.subr.mxu0 0.0
      %501 = vmatpush2.msra.mxu0 0.0
      %502 = vmatprep.subr.mxu0 0.0
      %503 = vmatpush2.msra.mxu0 0.0
      %504 = vmatprep.subr.mxu0 0.0
      %505 = vmatpush2.msra.mxu0 0.0
      %506 = vmatprep.subr.mxu0 0.0
      %507 = vmatpush2.msra.mxu0 0.0
      %508 = vmatprep.subr.mxu0 0.0
      %509 = vmatpush2.msra.mxu0 0.0
      %510 = vmatprep.subr.mxu0 0.0
      %511 = vmatpush2.msra.mxu0 0.0
      %512 = vmatprep.subr.mxu0 0.0
      %513 = vmatpush2.msra.mxu0 0.0
      %514 = vmatprep.subr.mxu0 0.0
      %515 = vmatpush2.msra.mxu0 0.0
      %516 = vmatprep.subr.mxu0 0.0
      %517 = vmatpush2.msra.mxu0 0.0
      %518 = vmatprep.subr.mxu0 0.0
      %519 = vmatpush2.msra.mxu0 0.0
      %520 = vmatprep.subr.mxu0 0.0
      %521 = vmatpush2.msra.mxu0 0.0
      %522 = vmatprep.subr.mxu0 0.0
      %523 = vmatpush2.msra.mxu0 0.0
      %524 = vmatprep.subr.mxu0 0.0
      %525 = vmatpush2.msra.mxu0 0.0
      %526 = vmatprep.subr.mxu0 0.0
      %527 = vmatpush2.msra.mxu0 0.0
      %528 = vmatprep.subr.mxu0 0.0
      %529 = vmatpush2.msra.mxu0 0.0
      %530 = vmatprep.mubr.f32.mxu0 0.0
      %531 = vmatmul.mubr.f32.gmra.mxu0 %v447
      %v532 = vpop.f32.mrf.mxu0
      %v533 = vadd.f32 0.0, %v532
      %v534 = vpop.f32.mrf.mxu0
      %535 = vmatprep.mubr.f32.mxu0 0.0
      %536 = vmatmul.mubr.f32.gmra.mxu0 %v448
      %v537 = vpop.f32.mrf.mxu0
      %v538 = vadd.f32 0.0, %v537
      %v539 = vpop.f32.mrf.mxu0
      %540 = vdwg.mxu0
      %541 = vmatprep.subr.mxu0 0.0
      %542 = vmatpush1.msra.mxu0 %v446
      %543 = vmatprep.subr.mxu0 0.0
      %544 = vmatpush1.msra.mxu0 %v445
      %545 = vmatprep.subr.mxu0 0.0
      %546 = vmatpush1.msra.mxu0 %v444
      %547 = vmatprep.subr.mxu0 0.0
      %548 = vmatpush1.msra.mxu0 %v443
      %549 = vmatprep.subr.mxu0 0.0
      %550 = vmatpush1.msra.mxu0 %v442
      %551 = vmatprep.subr.mxu0 0.0
      %552 = vmatpush1.msra.mxu0 %v441
      %553 = vmatprep.subr.mxu0 0.0
      %554 = vmatpush1.msra.mxu0 %v440
      %555 = vmatprep.subr.mxu0 0.0
      %556 = vmatpush1.msra.mxu0 %v439
      %557 = vmatprep.subr.mxu0 0.0
      %558 = vmatpush1.msra.mxu0 %v438
      %559 = vmatprep.subr.mxu0 0.0
      %560 = vmatpush1.msra.mxu0 %v437
      %561 = vmatprep.subr.mxu0 0.0
      %562 = vmatpush1.msra.mxu0 %v436
      %563 = vmatprep.subr.mxu0 0.0
      %564 = vmatpush1.msra.mxu0 %v435
      %565 = vmatprep.subr.mxu0 0.0
      %566 = vmatpush1.msra.mxu0 %v434
      %567 = vmatprep.subr.mxu0 0.0
      %568 = vmatpush1.msra.mxu0 %v433
      %569 = vmatprep.subr.mxu0 0.0
      %570 = vmatpush1.msra.mxu0 %v432
      %571 = vmatprep.subr.mxu0 0.0
      %572 = vmatpush1.msra.mxu0 %v431
      %573 = vmatprep.subr.mxu0 0.0
      %574 = vmatpush2.msra.mxu0 0.0
      %575 = vmatprep.subr.mxu0 0.0
      %576 = vmatpush2.msra.mxu0 0.0
      %577 = vmatprep.subr.mxu0 0.0
      %578 = vmatpush2.msra.mxu0 0.0
      %579 = vmatprep.subr.mxu0 0.0
      %580 = vmatpush2.msra.mxu0 0.0
      %581 = vmatprep.subr.mxu0 0.0
      %582 = vmatpush2.msra.mxu0 0.0
      %583 = vmatprep.subr.mxu0 0.0
      %584 = vmatpush2.msra.mxu0 0.0
      %585 = vmatprep.subr.mxu0 0.0
      %586 = vmatpush2.msra.mxu0 0.0
      %587 = vmatprep.subr.mxu0 0.0
      %588 = vmatpush2.msra.mxu0 0.0
      %589 = vmatprep.subr.mxu0 0.0
      %590 = vmatpush2.msra.mxu0 0.0
      %591 = vmatprep.subr.mxu0 0.0
      %592 = vmatpush2.msra.mxu0 0.0
      %593 = vmatprep.subr.mxu0 0.0
      %594 = vmatpush2.msra.mxu0 0.0
      %595 = vmatprep.subr.mxu0 0.0
      %596 = vmatpush2.msra.mxu0 0.0
      %597 = vmatprep.subr.mxu0 0.0
      %598 = vmatpush2.msra.mxu0 0.0
      %599 = vmatprep.subr.mxu0 0.0
      %600 = vmatpush2.msra.mxu0 0.0
      %601 = vmatprep.subr.mxu0 0.0
      %602 = vmatpush2.msra.mxu0 0.0
      %603 = vmatprep.subr.mxu0 0.0
      %604 = vmatpush2.msra.mxu0 0.0
      %605 = vmatprep.mubr.f32.mxu0 0.0
      %606 = vmatmul.mubr.f32.gmra.mxu0 %v429
      %v607 = vpop.f32.mrf.mxu0
      %v608 = vadd.f32 %v533, %v607
      %v609 = vpop.f32.mrf.mxu0
      %610 = vmatprep.mubr.f32.mxu0 0.0
      %611 = vmatmul.mubr.f32.gmra.mxu0 %v430
      %v612 = vpop.f32.mrf.mxu0
      %v613 = vadd.f32 %v538, %v612
      %v614 = vpop.f32.mrf.mxu0
      %615 = vdwg.mxu0
      %v616 = vld [vmem:[#allocation2 + $0x2] sm:$0xff]
      %v617 = vld [vmem:[#allocation2 + $0xa] sm:$0xff]
      %s618 = scalar_lea.vmem %s2, 256
      %v619 = vld [vmem:[%s618] sm:$0xff]
      %v620 = vld [vmem:[%s618 + $0x8] sm:$0xff]
      %v621 = vld [vmem:[%s618 + $0x10] sm:$0xff]
      %v622 = vld [vmem:[%s618 + $0x18] sm:$0xff]
      %v623 = vld [vmem:[%s618 + $0x20] sm:$0xff]
      %v624 = vld [vmem:[%s618 + $0x28] sm:$0xff]
      %v625 = vld [vmem:[%s618 + $0x30] sm:$0xff]
      %v626 = vld [vmem:[%s618 + $0x38] sm:$0xff]
      %v627 = vld [vmem:[%s618 + $0x40] sm:$0xff]
      %v628 = vld [vmem:[%s618 + $0x48] sm:$0xff]
      %v629 = vld [vmem:[%s618 + $0x50] sm:$0xff]
      %v630 = vld [vmem:[%s618 + $0x58] sm:$0xff]
      %v631 = vld [vmem:[%s618 + $0x60] sm:$0xff]
      %v632 = vld [vmem:[%s618 + $0x68] sm:$0xff]
      %v633 = vld [vmem:[%s618 + $0x70] sm:$0xff]
      %v634 = vld [vmem:[%s618 + $0x78] sm:$0xff]
      %635 = vmatprep.subr.mxu0 0.0
      %636 = vmatpush1.msra.mxu0 %v634
      %637 = vmatprep.subr.mxu0 0.0
      %638 = vmatpush1.msra.mxu0 %v633
      %639 = vmatprep.subr.mxu0 0.0
      %640 = vmatpush1.msra.mxu0 %v632
      %641 = vmatprep.subr.mxu0 0.0
      %642 = vmatpush1.msra.mxu0 %v631
      %643 = vmatprep.subr.mxu0 0.0
      %644 = vmatpush1.msra.mxu0 %v630
      %645 = vmatprep.subr.mxu0 0.0
      %646 = vmatpush1.msra.mxu0 %v629
      %647 = vmatprep.subr.mxu0 0.0
      %648 = vmatpush1.msra.mxu0 %v628
      %649 = vmatprep.subr.mxu0 0.0
      %650 = vmatpush1.msra.mxu0 %v627
      %651 = vmatprep.subr.mxu0 0.0
      %652 = vmatpush1.msra.mxu0 %v626
      %653 = vmatprep.subr.mxu0 0.0
      %654 = vmatpush1.msra.mxu0 %v625
      %655 = vmatprep.subr.mxu0 0.0
      %656 = vmatpush1.msra.mxu0 %v624
      %657 = vmatprep.subr.mxu0 0.0
      %658 = vmatpush1.msra.mxu0 %v623
      %659 = vmatprep.subr.mxu0 0.0
      %660 = vmatpush1.msra.mxu0 %v622
      %661 = vmatprep.subr.mxu0 0.0
      %662 = vmatpush1.msra.mxu0 %v621
      %663 = vmatprep.subr.mxu0 0.0
      %664 = vmatpush1.msra.mxu0 %v620
      %665 = vmatprep.subr.mxu0 0.0
      %666 = vmatpush1.msra.mxu0 %v619
      %667 = vmatprep.subr.mxu0 0.0
      %668 = vmatpush2.msra.mxu0 0.0
      %669 = vmatprep.subr.mxu0 0.0
      %670 = vmatpush2.msra.mxu0 0.0
      %671 = vmatprep.subr.mxu0 0.0
      %672 = vmatpush2.msra.mxu0 0.0
      %673 = vmatprep.subr.mxu0 0.0
      %674 = vmatpush2.msra.mxu0 0.0
      %675 = vmatprep.subr.mxu0 0.0
      %676 = vmatpush2.msra.mxu0 0.0
      %677 = vmatprep.subr.mxu0 0.0
      %678 = vmatpush2.msra.mxu0 0.0
      %679 = vmatprep.subr.mxu0 0.0
      %680 = vmatpush2.msra.mxu0 0.0
      %681 = vmatprep.subr.mxu0 0.0
      %682 = vmatpush2.msra.mxu0 0.0
      %683 = vmatprep.subr.mxu0 0.0
      %684 = vmatpush2.msra.mxu0 0.0
      %685 = vmatprep.subr.mxu0 0.0
      %686 = vmatpush2.msra.mxu0 0.0
      %687 = vmatprep.subr.mxu0 0.0
      %688 = vmatpush2.msra.mxu0 0.0
      %689 = vmatprep.subr.mxu0 0.0
      %690 = vmatpush2.msra.mxu0 0.0
      %691 = vmatprep.subr.mxu0 0.0
      %692 = vmatpush2.msra.mxu0 0.0
      %693 = vmatprep.subr.mxu0 0.0
      %694 = vmatpush2.msra.mxu0 0.0
      %695 = vmatprep.subr.mxu0 0.0
      %696 = vmatpush2.msra.mxu0 0.0
      %697 = vmatprep.subr.mxu0 0.0
      %698 = vmatpush2.msra.mxu0 0.0
      %699 = vmatprep.mubr.f32.mxu0 0.0
      %700 = vmatmul.mubr.f32.gmra.mxu0 %v616
      %v701 = vpop.f32.mrf.mxu0
      %v702 = vadd.f32 0.0, %v701
      %v703 = vpop.f32.mrf.mxu0
      %704 = vmatprep.mubr.f32.mxu0 0.0
      %705 = vmatmul.mubr.f32.gmra.mxu0 %v617
      %v706 = vpop.f32.mrf.mxu0
      %v707 = vadd.f32 0.0, %v706
      %v708 = vpop.f32.mrf.mxu0
      %709 = vdwg.mxu0
      %v710 = vadd.f32 %v608, %v702
      %v711 = vadd.f32 %v613, %v707
      %v712 = vld [vmem:[%s3] sm:$0x1]
      %v714 = vlaneseq
      %v715 = vshrl.u32 %v714, 7
      %v716 = vsub.s32 0, %v715
      %v717 = vrot.slane %v712, %v716
      %v719 = vadd.f32 %v710, %v717
      %v720 = vadd.f32 %v711, %v717
      %vm721 = vcmp.gt.f32.partialorder %v719, 0.0
      %vm722 = vcmp.gt.f32.partialorder %v720, 0.0
      %v723 = vmul.f32 %v719, 0.2
      %v724 = vmul.f32 %v720, 0.2
      %v725 = vsel %vm721, %v719, %v723
      %v726 = vsel %vm722, %v720, %v724
      %727 = vst [vmem:[#allocation2] sm:$0xff] 0.0
      %728 = vst [vmem:[#allocation2 + $0x8] sm:$0xff] 0.0
      %729 = vst [vmem:[#allocation2 + $0x10] sm:$0x3] 0.0
      %730 = vst [vmem:[#allocation2 + $0x1] sm:$0xff] %v725
      %731 = vst [vmem:[#allocation2 + $0x9] sm:$0xff] %v726
      %v732 = vld [vmem:[#allocation2] sm:$0xff]
      %v733 = vld [vmem:[#allocation2 + $0x8] sm:$0xff]
      %v734 = vld [vmem:[%s4] sm:$0xff]
      %v735 = vld [vmem:[%s4 + $0x8] sm:$0xff]
      %v736 = vld [vmem:[%s4 + $0x10] sm:$0xff]
      %v737 = vld [vmem:[%s4 + $0x18] sm:$0xff]
      %v738 = vld [vmem:[%s4 + $0x20] sm:$0xff]
      %v739 = vld [vmem:[%s4 + $0x28] sm:$0xff]
      %v740 = vld [vmem:[%s4 + $0x30] sm:$0xff]
      %v741 = vld [vmem:[%s4 + $0x38] sm:$0xff]
      %v742 = vld [vmem:[%s4 + $0x40] sm:$0xff]
      %v743 = vld [vmem:[%s4 + $0x48] sm:$0xff]
      %v744 = vld [vmem:[%s4 + $0x50] sm:$0xff]
      %v745 = vld [vmem:[%s4 + $0x58] sm:$0xff]
      %v746 = vld [vmem:[%s4 + $0x60] sm:$0xff]
      %v747 = vld [vmem:[%s4 + $0x68] sm:$0xff]
      %v748 = vld [vmem:[%s4 + $0x70] sm:$0xff]
      %v749 = vld [vmem:[%s4 + $0x78] sm:$0xff]
      %v750 = vld [vmem:[#allocation2 + $0x1] sm:$0xff]
      %v751 = vld [vmem:[#allocation2 + $0x9] sm:$0xff]
      %s752 = scalar_lea.vmem %s4, 128
      %v753 = vld [vmem:[%s752] sm:$0xff]
      %v754 = vld [vmem:[%s752 + $0x8] sm:$0xff]
      %v755 = vld [vmem:[%s752 + $0x10] sm:$0xff]
      %v756 = vld [vmem:[%s752 + $0x18] sm:$0xff]
      %v757 = vld [vmem:[%s752 + $0x20] sm:$0xff]
      %v758 = vld [vmem:[%s752 + $0x28] sm:$0xff]
      %v759 = vld [vmem:[%s752 + $0x30] sm:$0xff]
      %v760 = vld [vmem:[%s752 + $0x38] sm:$0xff]
      %v761 = vld [vmem:[%s752 + $0x40] sm:$0xff]
      %v762 = vld [vmem:[%s752 + $0x48] sm:$0xff]
      %v763 = vld [vmem:[%s752 + $0x50] sm:$0xff]
      %v764 = vld [vmem:[%s752 + $0x58] sm:$0xff]
      %v765 = vld [vmem:[%s752 + $0x60] sm:$0xff]
      %v766 = vld [vmem:[%s752 + $0x68] sm:$0xff]
      %v767 = vld [vmem:[%s752 + $0x70] sm:$0xff]
      %v768 = vld [vmem:[%s752 + $0x78] sm:$0xff]
      %769 = vmatprep.subr.mxu0 0.0
      %770 = vmatpush1.msra.mxu0 %v768
      %771 = vmatprep.subr.mxu0 0.0
      %772 = vmatpush1.msra.mxu0 %v767
      %773 = vmatprep.subr.mxu0 0.0
      %774 = vmatpush1.msra.mxu0 %v766
      %775 = vmatprep.subr.mxu0 0.0
      %776 = vmatpush1.msra.mxu0 %v765
      %777 = vmatprep.subr.mxu0 0.0
      %778 = vmatpush1.msra.mxu0 %v764
      %779 = vmatprep.subr.mxu0 0.0
      %780 = vmatpush1.msra.mxu0 %v763
      %781 = vmatprep.subr.mxu0 0.0
      %782 = vmatpush1.msra.mxu0 %v762
      %783 = vmatprep.subr.mxu0 0.0
      %784 = vmatpush1.msra.mxu0 %v761
      %785 = vmatprep.subr.mxu0 0.0
      %786 = vmatpush1.msra.mxu0 %v760
      %787 = vmatprep.subr.mxu0 0.0
      %788 = vmatpush1.msra.mxu0 %v759
      %789 = vmatprep.subr.mxu0 0.0
      %790 = vmatpush1.msra.mxu0 %v758
      %791 = vmatprep.subr.mxu0 0.0
      %792 = vmatpush1.msra.mxu0 %v757
      %793 = vmatprep.subr.mxu0 0.0
      %794 = vmatpush1.msra.mxu0 %v756
      %795 = vmatprep.subr.mxu0 0.0
      %796 = vmatpush1.msra.mxu0 %v755
      %797 = vmatprep.subr.mxu0 0.0
      %798 = vmatpush1.msra.mxu0 %v754
      %799 = vmatprep.subr.mxu0 0.0
      %800 = vmatpush1.msra.mxu0 %v753
      %801 = vmatprep.subr.mxu0 0.0
      %802 = vmatpush2.msra.mxu0 0.0
      %803 = vmatprep.subr.mxu0 0.0
      %804 = vmatpush2.msra.mxu0 0.0
      %805 = vmatprep.subr.mxu0 0.0
      %806 = vmatpush2.msra.mxu0 0.0
      %807 = vmatprep.subr.mxu0 0.0
      %808 = vmatpush2.msra.mxu0 0.0
      %809 = vmatprep.subr.mxu0 0.0
      %810 = vmatpush2.msra.mxu0 0.0
      %811 = vmatprep.subr.mxu0 0.0
      %812 = vmatpush2.msra.mxu0 0.0
      %813 = vmatprep.subr.mxu0 0.0
      %814 = vmatpush2.msra.mxu0 0.0
      %815 = vmatprep.subr.mxu0 0.0
      %816 = vmatpush2.msra.mxu0 0.0
      %817 = vmatprep.subr.mxu0 0.0
      %818 = vmatpush2.msra.mxu0 0.0
      %819 = vmatprep.subr.mxu0 0.0
      %820 = vmatpush2.msra.mxu0 0.0
      %821 = vmatprep.subr.mxu0 0.0
      %822 = vmatpush2.msra.mxu0 0.0
      %823 = vmatprep.subr.mxu0 0.0
      %824 = vmatpush2.msra.mxu0 0.0
      %825 = vmatprep.subr.mxu0 0.0
      %826 = vmatpush2.msra.mxu0 0.0
      %827 = vmatprep.subr.mxu0 0.0
      %828 = vmatpush2.msra.mxu0 0.0
      %829 = vmatprep.subr.mxu0 0.0
      %830 = vmatpush2.msra.mxu0 0.0
      %831 = vmatprep.subr.mxu0 0.0
      %832 = vmatpush2.msra.mxu0 0.0
      %833 = vmatprep.mubr.f32.mxu0 0.0
      %834 = vmatmul.mubr.f32.gmra.mxu0 %v750
      %v835 = vpop.f32.mrf.mxu0
      %v836 = vadd.f32 0.0, %v835
      %v837 = vpop.f32.mrf.mxu0
      %838 = vmatprep.mubr.f32.mxu0 0.0
      %839 = vmatmul.mubr.f32.gmra.mxu0 %v751
      %v840 = vpop.f32.mrf.mxu0
      %v841 = vadd.f32 0.0, %v840
      %v842 = vpop.f32.mrf.mxu0
      %843 = vdwg.mxu0
      %844 = vmatprep.subr.mxu0 0.0
      %845 = vmatpush1.msra.mxu0 %v749
      %846 = vmatprep.subr.mxu0 0.0
      %847 = vmatpush1.msra.mxu0 %v748
      %848 = vmatprep.subr.mxu0 0.0
      %849 = vmatpush1.msra.mxu0 %v747
      %850 = vmatprep.subr.mxu0 0.0
      %851 = vmatpush1.msra.mxu0 %v746
      %852 = vmatprep.subr.mxu0 0.0
      %853 = vmatpush1.msra.mxu0 %v745
      %854 = vmatprep.subr.mxu0 0.0
      %855 = vmatpush1.msra.mxu0 %v744
      %856 = vmatprep.subr.mxu0 0.0
      %857 = vmatpush1.msra.mxu0 %v743
      %858 = vmatprep.subr.mxu0 0.0
      %859 = vmatpush1.msra.mxu0 %v742
      %860 = vmatprep.subr.mxu0 0.0
      %861 = vmatpush1.msra.mxu0 %v741
      %862 = vmatprep.subr.mxu0 0.0
      %863 = vmatpush1.msra.mxu0 %v740
      %864 = vmatprep.subr.mxu0 0.0
      %865 = vmatpush1.msra.mxu0 %v739
      %866 = vmatprep.subr.mxu0 0.0
      %867 = vmatpush1.msra.mxu0 %v738
      %868 = vmatprep.subr.mxu0 0.0
      %869 = vmatpush1.msra.mxu0 %v737
      %870 = vmatprep.subr.mxu0 0.0
      %871 = vmatpush1.msra.mxu0 %v736
      %872 = vmatprep.subr.mxu0 0.0
      %873 = vmatpush1.msra.mxu0 %v735
      %874 = vmatprep.subr.mxu0 0.0
      %875 = vmatpush1.msra.mxu0 %v734
      %876 = vmatprep.subr.mxu0 0.0
      %877 = vmatpush2.msra.mxu0 0.0
      %878 = vmatprep.subr.mxu0 0.0
      %879 = vmatpush2.msra.mxu0 0.0
      %880 = vmatprep.subr.mxu0 0.0
      %881 = vmatpush2.msra.mxu0 0.0
      %882 = vmatprep.subr.mxu0 0.0
      %883 = vmatpush2.msra.mxu0 0.0
      %884 = vmatprep.subr.mxu0 0.0
      %885 = vmatpush2.msra.mxu0 0.0
      %886 = vmatprep.subr.mxu0 0.0
      %887 = vmatpush2.msra.mxu0 0.0
      %888 = vmatprep.subr.mxu0 0.0
      %889 = vmatpush2.msra.mxu0 0.0
      %890 = vmatprep.subr.mxu0 0.0
      %891 = vmatpush2.msra.mxu0 0.0
      %892 = vmatprep.subr.mxu0 0.0
      %893 = vmatpush2.msra.mxu0 0.0
      %894 = vmatprep.subr.mxu0 0.0
      %895 = vmatpush2.msra.mxu0 0.0
      %896 = vmatprep.subr.mxu0 0.0
      %897 = vmatpush2.msra.mxu0 0.0
      %898 = vmatprep.subr.mxu0 0.0
      %899 = vmatpush2.msra.mxu0 0.0
      %900 = vmatprep.subr.mxu0 0.0
      %901 = vmatpush2.msra.mxu0 0.0
      %902 = vmatprep.subr.mxu0 0.0
      %903 = vmatpush2.msra.mxu0 0.0
      %904 = vmatprep.subr.mxu0 0.0
      %905 = vmatpush2.msra.mxu0 0.0
      %906 = vmatprep.subr.mxu0 0.0
      %907 = vmatpush2.msra.mxu0 0.0
      %908 = vmatprep.mubr.f32.mxu0 0.0
      %909 = vmatmul.mubr.f32.gmra.mxu0 %v732
      %v910 = vpop.f32.mrf.mxu0
      %v911 = vadd.f32 %v836, %v910
      %v912 = vpop.f32.mrf.mxu0
      %913 = vmatprep.mubr.f32.mxu0 0.0
      %914 = vmatmul.mubr.f32.gmra.mxu0 %v733
      %v915 = vpop.f32.mrf.mxu0
      %v916 = vadd.f32 %v841, %v915
      %v917 = vpop.f32.mrf.mxu0
      %918 = vdwg.mxu0
      %v919 = vld [vmem:[#allocation2 + $0x2] sm:$0xff]
      %v920 = vld [vmem:[#allocation2 + $0xa] sm:$0xff]
      %s921 = scalar_lea.vmem %s4, 256
      %v922 = vld [vmem:[%s921] sm:$0xff]
      %v923 = vld [vmem:[%s921 + $0x8] sm:$0xff]
      %v924 = vld [vmem:[%s921 + $0x10] sm:$0xff]
      %v925 = vld [vmem:[%s921 + $0x18] sm:$0xff]
      %v926 = vld [vmem:[%s921 + $0x20] sm:$0xff]
      %v927 = vld [vmem:[%s921 + $0x28] sm:$0xff]
      %v928 = vld [vmem:[%s921 + $0x30] sm:$0xff]
      %v929 = vld [vmem:[%s921 + $0x38] sm:$0xff]
      %v930 = vld [vmem:[%s921 + $0x40] sm:$0xff]
      %v931 = vld [vmem:[%s921 + $0x48] sm:$0xff]
      %v932 = vld [vmem:[%s921 + $0x50] sm:$0xff]
      %v933 = vld [vmem:[%s921 + $0x58] sm:$0xff]
      %v934 = vld [vmem:[%s921 + $0x60] sm:$0xff]
      %v935 = vld [vmem:[%s921 + $0x68] sm:$0xff]
      %v936 = vld [vmem:[%s921 + $0x70] sm:$0xff]
      %v937 = vld [vmem:[%s921 + $0x78] sm:$0xff]
      %938 = vmatprep.subr.mxu0 0.0
      %939 = vmatpush1.msra.mxu0 %v937
      %940 = vmatprep.subr.mxu0 0.0
      %941 = vmatpush1.msra.mxu0 %v936
      %942 = vmatprep.subr.mxu0 0.0
      %943 = vmatpush1.msra.mxu0 %v935
      %944 = vmatprep.subr.mxu0 0.0
      %945 = vmatpush1.msra.mxu0 %v934
      %946 = vmatprep.subr.mxu0 0.0
      %947 = vmatpush1.msra.mxu0 %v933
      %948 = vmatprep.subr.mxu0 0.0
      %949 = vmatpush1.msra.mxu0 %v932
      %950 = vmatprep.subr.mxu0 0.0
      %951 = vmatpush1.msra.mxu0 %v931
      %952 = vmatprep.subr.mxu0 0.0
      %953 = vmatpush1.msra.mxu0 %v930
      %954 = vmatprep.subr.mxu0 0.0
      %955 = vmatpush1.msra.mxu0 %v929
      %956 = vmatprep.subr.mxu0 0.0
      %957 = vmatpush1.msra.mxu0 %v928
      %958 = vmatprep.subr.mxu0 0.0
      %959 = vmatpush1.msra.mxu0 %v927
      %960 = vmatprep.subr.mxu0 0.0
      %961 = vmatpush1.msra.mxu0 %v926
      %962 = vmatprep.subr.mxu0 0.0
      %963 = vmatpush1.msra.mxu0 %v925
      %964 = vmatprep.subr.mxu0 0.0
      %965 = vmatpush1.msra.mxu0 %v924
      %966 = vmatprep.subr.mxu0 0.0
      %967 = vmatpush1.msra.mxu0 %v923
      %968 = vmatprep.subr.mxu0 0.0
      %969 = vmatpush1.msra.mxu0 %v922
      %970 = vmatprep.subr.mxu0 0.0
      %971 = vmatpush2.msra.mxu0 0.0
      %972 = vmatprep.subr.mxu0 0.0
      %973 = vmatpush2.msra.mxu0 0.0
      %974 = vmatprep.subr.mxu0 0.0
      %975 = vmatpush2.msra.mxu0 0.0
      %976 = vmatprep.subr.mxu0 0.0
      %977 = vmatpush2.msra.mxu0 0.0
      %978 = vmatprep.subr.mxu0 0.0
      %979 = vmatpush2.msra.mxu0 0.0
      %980 = vmatprep.subr.mxu0 0.0
      %981 = vmatpush2.msra.mxu0 0.0
      %982 = vmatprep.subr.mxu0 0.0
      %983 = vmatpush2.msra.mxu0 0.0
      %984 = vmatprep.subr.mxu0 0.0
      %985 = vmatpush2.msra.mxu0 0.0
      %986 = vmatprep.subr.mxu0 0.0
      %987 = vmatpush2.msra.mxu0 0.0
      %988 = vmatprep.subr.mxu0 0.0
      %989 = vmatpush2.msra.mxu0 0.0
      %990 = vmatprep.subr.mxu0 0.0
      %991 = vmatpush2.msra.mxu0 0.0
      %992 = vmatprep.subr.mxu0 0.0
      %993 = vmatpush2.msra.mxu0 0.0
      %994 = vmatprep.subr.mxu0 0.0
      %995 = vmatpush2.msra.mxu0 0.0
      %996 = vmatprep.subr.mxu0 0.0
      %997 = vmatpush2.msra.mxu0 0.0
      %998 = vmatprep.subr.mxu0 0.0
      %999 = vmatpush2.msra.mxu0 0.0
      %1000 = vmatprep.subr.mxu0 0.0
      %1001 = vmatpush2.msra.mxu0 0.0
      %1002 = vmatprep.mubr.f32.mxu0 0.0
      %1003 = vmatmul.mubr.f32.gmra.mxu0 %v919
      %v1004 = vpop.f32.mrf.mxu0
      %v1005 = vadd.f32 0.0, %v1004
      %v1006 = vpop.f32.mrf.mxu0
      %1007 = vmatprep.mubr.f32.mxu0 0.0
      %1008 = vmatmul.mubr.f32.gmra.mxu0 %v920
      %v1009 = vpop.f32.mrf.mxu0
      %v1010 = vadd.f32 0.0, %v1009
      %v1011 = vpop.f32.mrf.mxu0
      %1012 = vdwg.mxu0
      %v1013 = vadd.f32 %v911, %v1005
      %v1014 = vadd.f32 %v916, %v1010
      %v1015 = vld [vmem:[%s5] sm:$0x1]
      %v1017 = vlaneseq
      %v1018 = vshrl.u32 %v1017, 7
      %v1019 = vsub.s32 0, %v1018
      %v1020 = vrot.slane %v1015, %v1019
      %v1022 = vadd.f32 %v1013, %v1020
      %v1023 = vadd.f32 %v1014, %v1020
      %v1024 = vld [vmem:[%s6] sm:$0xff]
      %v1025 = vld [vmem:[%s6 + $0x8] sm:$0xff]
      %v1026 = vld [vmem:[%s6 + $0x10] sm:$0xff]
      %v1027 = vld [vmem:[%s6 + $0x18] sm:$0xff]
      %v1028 = vld [vmem:[%s6 + $0x20] sm:$0xff]
      %v1029 = vld [vmem:[%s6 + $0x28] sm:$0xff]
      %v1030 = vld [vmem:[%s6 + $0x30] sm:$0xff]
      %v1031 = vld [vmem:[%s6 + $0x38] sm:$0xff]
      %v1032 = vld [vmem:[%s6 + $0x40] sm:$0xff]
      %v1033 = vld [vmem:[%s6 + $0x48] sm:$0xff]
      %v1034 = vld [vmem:[%s6 + $0x50] sm:$0xff]
      %v1035 = vld [vmem:[%s6 + $0x58] sm:$0xff]
      %v1036 = vld [vmem:[%s6 + $0x60] sm:$0xff]
      %v1037 = vld [vmem:[%s6 + $0x68] sm:$0xff]
      %v1038 = vld [vmem:[%s6 + $0x70] sm:$0xff]
      %v1039 = vld [vmem:[%s6 + $0x78] sm:$0xff]
      %v1040 = vld [vmem:[%s7] sm:$0x1]
      %v1042 = vlaneseq
      %v1043 = vshrl.u32 %v1042, 7
      %v1044 = vsub.s32 0, %v1043
      %v1045 = vrot.slane %v1040, %v1044
      %1047 = vmatprep.subr.mxu0 0.0
      %1048 = vmatpush1.msra.mxu0 %v1039
      %1049 = vmatprep.subr.mxu0 0.0
      %1050 = vmatpush1.msra.mxu0 %v1038
      %1051 = vmatprep.subr.mxu0 0.0
      %1052 = vmatpush1.msra.mxu0 %v1037
      %1053 = vmatprep.subr.mxu0 0.0
      %1054 = vmatpush1.msra.mxu0 %v1036
      %1055 = vmatprep.subr.mxu0 0.0
      %1056 = vmatpush1.msra.mxu0 %v1035
      %1057 = vmatprep.subr.mxu0 0.0
      %1058 = vmatpush1.msra.mxu0 %v1034
      %1059 = vmatprep.subr.mxu0 0.0
      %1060 = vmatpush1.msra.mxu0 %v1033
      %1061 = vmatprep.subr.mxu0 0.0
      %1062 = vmatpush1.msra.mxu0 %v1032
      %1063 = vmatprep.subr.mxu0 0.0
      %1064 = vmatpush1.msra.mxu0 %v1031
      %1065 = vmatprep.subr.mxu0 0.0
      %1066 = vmatpush1.msra.mxu0 %v1030
      %1067 = vmatprep.subr.mxu0 0.0
      %1068 = vmatpush1.msra.mxu0 %v1029
      %1069 = vmatprep.subr.mxu0 0.0
      %1070 = vmatpush1.msra.mxu0 %v1028
      %1071 = vmatprep.subr.mxu0 0.0
      %1072 = vmatpush1.msra.mxu0 %v1027
      %1073 = vmatprep.subr.mxu0 0.0
      %1074 = vmatpush1.msra.mxu0 %v1026
      %1075 = vmatprep.subr.mxu0 0.0
      %1076 = vmatpush1.msra.mxu0 %v1025
      %1077 = vmatprep.subr.mxu0 0.0
      %1078 = vmatpush1.msra.mxu0 %v1024
      %1079 = vmatprep.subr.mxu0 0.0
      %1080 = vmatpush2.msra.mxu0 0.0
      %1081 = vmatprep.subr.mxu0 0.0
      %1082 = vmatpush2.msra.mxu0 0.0
      %1083 = vmatprep.subr.mxu0 0.0
      %1084 = vmatpush2.msra.mxu0 0.0
      %1085 = vmatprep.subr.mxu0 0.0
      %1086 = vmatpush2.msra.mxu0 0.0
      %1087 = vmatprep.subr.mxu0 0.0
      %1088 = vmatpush2.msra.mxu0 0.0
      %1089 = vmatprep.subr.mxu0 0.0
      %1090 = vmatpush2.msra.mxu0 0.0
      %1091 = vmatprep.subr.mxu0 0.0
      %1092 = vmatpush2.msra.mxu0 0.0
      %1093 = vmatprep.subr.mxu0 0.0
      %1094 = vmatpush2.msra.mxu0 0.0
      %1095 = vmatprep.subr.mxu0 0.0
      %1096 = vmatpush2.msra.mxu0 0.0
      %1097 = vmatprep.subr.mxu0 0.0
      %1098 = vmatpush2.msra.mxu0 0.0
      %1099 = vmatprep.subr.mxu0 0.0
      %1100 = vmatpush2.msra.mxu0 0.0
      %1101 = vmatprep.subr.mxu0 0.0
      %1102 = vmatpush2.msra.mxu0 0.0
      %1103 = vmatprep.subr.mxu0 0.0
      %1104 = vmatpush2.msra.mxu0 0.0
      %1105 = vmatprep.subr.mxu0 0.0
      %1106 = vmatpush2.msra.mxu0 0.0
      %1107 = vmatprep.subr.mxu0 0.0
      %1108 = vmatpush2.msra.mxu0 0.0
      %1109 = vmatprep.subr.mxu0 0.0
      %1110 = vmatpush2.msra.mxu0 0.0
      %1111 = vmatprep.mubr.f32.mxu0 0.0
      %1112 = vmatmul.mubr.f32.gmra.mxu0 %v422
      %v1113 = vpop.f32.mrf.mxu0
      %v1114 = vadd.f32 %v1045, %v1113
      %v1115 = vpop.f32.mrf.mxu0
      %1116 = vmatprep.mubr.f32.mxu0 0.0
      %1117 = vmatmul.mubr.f32.gmra.mxu0 %v423
      %v1118 = vpop.f32.mrf.mxu0
      %v1119 = vadd.f32 %v1045, %v1118
      %v1120 = vpop.f32.mrf.mxu0
      %1121 = vdwg.mxu0
      %vm1122 = vcmp.gt.f32.partialorder %v1114, 0.0
      %vm1123 = vcmp.gt.f32.partialorder %v1119, 0.0
      %v1124 = vmul.f32 %v1114, 0.2
      %v1125 = vmul.f32 %v1119, 0.2
      %v1126 = vsel %vm1122, %v1114, %v1124
      %v1127 = vsel %vm1123, %v1119, %v1125
      %v1128 = vld [vmem:[%s8] sm:$0xff]
      %v1129 = vld [vmem:[%s8 + $0x8] sm:$0xff]
      %v1130 = vld [vmem:[%s8 + $0x10] sm:$0xff]
      %v1131 = vld [vmem:[%s8 + $0x18] sm:$0xff]
      %v1132 = vld [vmem:[%s8 + $0x20] sm:$0xff]
      %v1133 = vld [vmem:[%s8 + $0x28] sm:$0xff]
      %v1134 = vld [vmem:[%s8 + $0x30] sm:$0xff]
      %v1135 = vld [vmem:[%s8 + $0x38] sm:$0xff]
      %v1136 = vld [vmem:[%s8 + $0x40] sm:$0xff]
      %v1137 = vld [vmem:[%s8 + $0x48] sm:$0xff]
      %v1138 = vld [vmem:[%s8 + $0x50] sm:$0xff]
      %v1139 = vld [vmem:[%s8 + $0x58] sm:$0xff]
      %v1140 = vld [vmem:[%s8 + $0x60] sm:$0xff]
      %v1141 = vld [vmem:[%s8 + $0x68] sm:$0xff]
      %v1142 = vld [vmem:[%s8 + $0x70] sm:$0xff]
      %v1143 = vld [vmem:[%s8 + $0x78] sm:$0xff]
      %v1144 = vld [vmem:[%s9] sm:$0x1]
      %v1146 = vlaneseq
      %v1147 = vshrl.u32 %v1146, 7
      %v1148 = vsub.s32 0, %v1147
      %v1149 = vrot.slane %v1144, %v1148
      %1151 = vmatprep.subr.mxu0 0.0
      %1152 = vmatpush1.msra.mxu0 %v1143
      %1153 = vmatprep.subr.mxu0 0.0
      %1154 = vmatpush1.msra.mxu0 %v1142
      %1155 = vmatprep.subr.mxu0 0.0
      %1156 = vmatpush1.msra.mxu0 %v1141
      %1157 = vmatprep.subr.mxu0 0.0
      %1158 = vmatpush1.msra.mxu0 %v1140
      %1159 = vmatprep.subr.mxu0 0.0
      %1160 = vmatpush1.msra.mxu0 %v1139
      %1161 = vmatprep.subr.mxu0 0.0
      %1162 = vmatpush1.msra.mxu0 %v1138
      %1163 = vmatprep.subr.mxu0 0.0
      %1164 = vmatpush1.msra.mxu0 %v1137
      %1165 = vmatprep.subr.mxu0 0.0
      %1166 = vmatpush1.msra.mxu0 %v1136
      %1167 = vmatprep.subr.mxu0 0.0
      %1168 = vmatpush1.msra.mxu0 %v1135
      %1169 = vmatprep.subr.mxu0 0.0
      %1170 = vmatpush1.msra.mxu0 %v1134
      %1171 = vmatprep.subr.mxu0 0.0
      %1172 = vmatpush1.msra.mxu0 %v1133
      %1173 = vmatprep.subr.mxu0 0.0
      %1174 = vmatpush1.msra.mxu0 %v1132
      %1175 = vmatprep.subr.mxu0 0.0
      %1176 = vmatpush1.msra.mxu0 %v1131
      %1177 = vmatprep.subr.mxu0 0.0
      %1178 = vmatpush1.msra.mxu0 %v1130
      %1179 = vmatprep.subr.mxu0 0.0
      %1180 = vmatpush1.msra.mxu0 %v1129
      %1181 = vmatprep.subr.mxu0 0.0
      %1182 = vmatpush1.msra.mxu0 %v1128
      %1183 = vmatprep.subr.mxu0 0.0
      %1184 = vmatpush2.msra.mxu0 0.0
      %1185 = vmatprep.subr.mxu0 0.0
      %1186 = vmatpush2.msra.mxu0 0.0
      %1187 = vmatprep.subr.mxu0 0.0
      %1188 = vmatpush2.msra.mxu0 0.0
      %1189 = vmatprep.subr.mxu0 0.0
      %1190 = vmatpush2.msra.mxu0 0.0
      %1191 = vmatprep.subr.mxu0 0.0
      %1192 = vmatpush2.msra.mxu0 0.0
      %1193 = vmatprep.subr.mxu0 0.0
      %1194 = vmatpush2.msra.mxu0 0.0
      %1195 = vmatprep.subr.mxu0 0.0
      %1196 = vmatpush2.msra.mxu0 0.0
      %1197 = vmatprep.subr.mxu0 0.0
      %1198 = vmatpush2.msra.mxu0 0.0
      %1199 = vmatprep.subr.mxu0 0.0
      %1200 = vmatpush2.msra.mxu0 0.0
      %1201 = vmatprep.subr.mxu0 0.0
      %1202 = vmatpush2.msra.mxu0 0.0
      %1203 = vmatprep.subr.mxu0 0.0
      %1204 = vmatpush2.msra.mxu0 0.0
      %1205 = vmatprep.subr.mxu0 0.0
      %1206 = vmatpush2.msra.mxu0 0.0
      %1207 = vmatprep.subr.mxu0 0.0
      %1208 = vmatpush2.msra.mxu0 0.0
      %1209 = vmatprep.subr.mxu0 0.0
      %1210 = vmatpush2.msra.mxu0 0.0
      %1211 = vmatprep.subr.mxu0 0.0
      %1212 = vmatpush2.msra.mxu0 0.0
      %1213 = vmatprep.subr.mxu0 0.0
      %1214 = vmatpush2.msra.mxu0 0.0
      %1215 = vmatprep.mubr.f32.mxu0 0.0
      %1216 = vmatmul.mubr.f32.gmra.mxu0 %v1126
      %v1217 = vpop.f32.mrf.mxu0
      %v1218 = vadd.f32 %v1149, %v1217
      %v1219 = vpop.f32.mrf.mxu0
      %1220 = vmatprep.mubr.f32.mxu0 0.0
      %1221 = vmatmul.mubr.f32.gmra.mxu0 %v1127
      %v1222 = vpop.f32.mrf.mxu0
      %v1223 = vadd.f32 %v1149, %v1222
      %v1224 = vpop.f32.mrf.mxu0
      %1225 = vdwg.mxu0
      %v1226 = vmul.f32 %v1022, %v1218
      %v1227 = vmul.f32 %v1023, %v1223
      %v1228 = vadd.f32 %v420, %v1226
      %v1229 = vadd.f32 %v421, %v1227
      %v1230 = vadd.f32 %v422, %v1218
      %v1231 = vadd.f32 %v423, %v1223
      %1232 = vst [vmem:[#allocation2] sm:$0xff] 0.0
      %1233 = vst [vmem:[#allocation2 + $0x8] sm:$0xff] 0.0
      %1234 = vst [vmem:[#allocation2 + $0x10] sm:$0x3] 0.0
      %1235 = vst [vmem:[#allocation2 + $0x1] sm:$0xff] %v1228
      %1236 = vst [vmem:[#allocation2 + $0x9] sm:$0xff] %v1229
      %v1237 = vld [vmem:[#allocation2] sm:$0xff]
      %v1238 = vld [vmem:[#allocation2 + $0x8] sm:$0xff]
      %s1239 = scalar_lea.vmem %s2, 384
      %v1240 = vld [vmem:[%s1239] sm:$0xff]
      %v1241 = vld [vmem:[%s1239 + $0x8] sm:$0xff]
      %v1242 = vld [vmem:[%s1239 + $0x10] sm:$0xff]
      %v1243 = vld [vmem:[%s1239 + $0x18] sm:$0xff]
      %v1244 = vld [vmem:[%s1239 + $0x20] sm:$0xff]
      %v1245 = vld [vmem:[%s1239 + $0x28] sm:$0xff]
      %v1246 = vld [vmem:[%s1239 + $0x30] sm:$0xff]
      %v1247 = vld [vmem:[%s1239 + $0x38] sm:$0xff]
      %v1248 = vld [vmem:[%s1239 + $0x40] sm:$0xff]
      %v1249 = vld [vmem:[%s1239 + $0x48] sm:$0xff]
      %v1250 = vld [vmem:[%s1239 + $0x50] sm:$0xff]
      %v1251 = vld [vmem:[%s1239 + $0x58] sm:$0xff]
      %v1252 = vld [vmem:[%s1239 + $0x60] sm:$0xff]
      %v1253 = vld [vmem:[%s1239 + $0x68] sm:$0xff]
      %v1254 = vld [vmem:[%s1239 + $0x70] sm:$0xff]
      %v1255 = vld [vmem:[%s1239 + $0x78] sm:$0xff]
      %v1256 = vld [vmem:[#allocation2 + $0x1] sm:$0xff]
      %v1257 = vld [vmem:[#allocation2 + $0x9] sm:$0xff]
      %s1258 = scalar_lea.vmem %s2, 512
      %v1259 = vld [vmem:[%s1258] sm:$0xff]
      %v1260 = vld [vmem:[%s1258 + $0x8] sm:$0xff]
      %v1261 = vld [vmem:[%s1258 + $0x10] sm:$0xff]
      %v1262 = vld [vmem:[%s1258 + $0x18] sm:$0xff]
      %v1263 = vld [vmem:[%s1258 + $0x20] sm:$0xff]
      %v1264 = vld [vmem:[%s1258 + $0x28] sm:$0xff]
      %v1265 = vld [vmem:[%s1258 + $0x30] sm:$0xff]
      %v1266 = vld [vmem:[%s1258 + $0x38] sm:$0xff]
      %v1267 = vld [vmem:[%s1258 + $0x40] sm:$0xff]
      %v1268 = vld [vmem:[%s1258 + $0x48] sm:$0xff]
      %v1269 = vld [vmem:[%s1258 + $0x50] sm:$0xff]
      %v1270 = vld [vmem:[%s1258 + $0x58] sm:$0xff]
      %v1271 = vld [vmem:[%s1258 + $0x60] sm:$0xff]
      %v1272 = vld [vmem:[%s1258 + $0x68] sm:$0xff]
      %v1273 = vld [vmem:[%s1258 + $0x70] sm:$0xff]
      %v1274 = vld [vmem:[%s1258 + $0x78] sm:$0xff]
      %1275 = vmatprep.subr.mxu0 0.0
      %1276 = vmatpush1.msra.mxu0 %v1274
      %1277 = vmatprep.subr.mxu0 0.0
      %1278 = vmatpush1.msra.mxu0 %v1273
      %1279 = vmatprep.subr.mxu0 0.0
      %1280 = vmatpush1.msra.mxu0 %v1272
      %1281 = vmatprep.subr.mxu0 0.0
      %1282 = vmatpush1.msra.mxu0 %v1271
      %1283 = vmatprep.subr.mxu0 0.0
      %1284 = vmatpush1.msra.mxu0 %v1270
      %1285 = vmatprep.subr.mxu0 0.0
      %1286 = vmatpush1.msra.mxu0 %v1269
      %1287 = vmatprep.subr.mxu0 0.0
      %1288 = vmatpush1.msra.mxu0 %v1268
      %1289 = vmatprep.subr.mxu0 0.0
      %1290 = vmatpush1.msra.mxu0 %v1267
      %1291 = vmatprep.subr.mxu0 0.0
      %1292 = vmatpush1.msra.mxu0 %v1266
      %1293 = vmatprep.subr.mxu0 0.0
      %1294 = vmatpush1.msra.mxu0 %v1265
      %1295 = vmatprep.subr.mxu0 0.0
      %1296 = vmatpush1.msra.mxu0 %v1264
      %1297 = vmatprep.subr.mxu0 0.0
      %1298 = vmatpush1.msra.mxu0 %v1263
      %1299 = vmatprep.subr.mxu0 0.0
      %1300 = vmatpush1.msra.mxu0 %v1262
      %1301 = vmatprep.subr.mxu0 0.0
      %1302 = vmatpush1.msra.mxu0 %v1261
      %1303 = vmatprep.subr.mxu0 0.0
      %1304 = vmatpush1.msra.mxu0 %v1260
      %1305 = vmatprep.subr.mxu0 0.0
      %1306 = vmatpush1.msra.mxu0 %v1259
      %1307 = vmatprep.subr.mxu0 0.0
      %1308 = vmatpush2.msra.mxu0 0.0
      %1309 = vmatprep.subr.mxu0 0.0
      %1310 = vmatpush2.msra.mxu0 0.0
      %1311 = vmatprep.subr.mxu0 0.0
      %1312 = vmatpush2.msra.mxu0 0.0
      %1313 = vmatprep.subr.mxu0 0.0
      %1314 = vmatpush2.msra.mxu0 0.0
      %1315 = vmatprep.subr.mxu0 0.0
      %1316 = vmatpush2.msra.mxu0 0.0
      %1317 = vmatprep.subr.mxu0 0.0
      %1318 = vmatpush2.msra.mxu0 0.0
      %1319 = vmatprep.subr.mxu0 0.0
      %1320 = vmatpush2.msra.mxu0 0.0
      %1321 = vmatprep.subr.mxu0 0.0
      %1322 = vmatpush2.msra.mxu0 0.0
      %1323 = vmatprep.subr.mxu0 0.0
      %1324 = vmatpush2.msra.mxu0 0.0
      %1325 = vmatprep.subr.mxu0 0.0
      %1326 = vmatpush2.msra.mxu0 0.0
      %1327 = vmatprep.subr.mxu0 0.0
      %1328 = vmatpush2.msra.mxu0 0.0
      %1329 = vmatprep.subr.mxu0 0.0
      %1330 = vmatpush2.msra.mxu0 0.0
      %1331 = vmatprep.subr.mxu0 0.0
      %1332 = vmatpush2.msra.mxu0 0.0
      %1333 = vmatprep.subr.mxu0 0.0
      %1334 = vmatpush2.msra.mxu0 0.0
      %1335 = vmatprep.subr.mxu0 0.0
      %1336 = vmatpush2.msra.mxu0 0.0
      %1337 = vmatprep.subr.mxu0 0.0
      %1338 = vmatpush2.msra.mxu0 0.0
      %1339 = vmatprep.mubr.f32.mxu0 0.0
      %1340 = vmatmul.mubr.f32.gmra.mxu0 %v1256
      %v1341 = vpop.f32.mrf.mxu0
      %v1342 = vadd.f32 0.0, %v1341
      %v1343 = vpop.f32.mrf.mxu0
      %1344 = vmatprep.mubr.f32.mxu0 0.0
      %1345 = vmatmul.mubr.f32.gmra.mxu0 %v1257
      %v1346 = vpop.f32.mrf.mxu0
      %v1347 = vadd.f32 0.0, %v1346
      %v1348 = vpop.f32.mrf.mxu0
      %1349 = vdwg.mxu0
      %1350 = vmatprep.subr.mxu0 0.0
      %1351 = vmatpush1.msra.mxu0 %v1255
      %1352 = vmatprep.subr.mxu0 0.0
      %1353 = vmatpush1.msra.mxu0 %v1254
      %1354 = vmatprep.subr.mxu0 0.0
      %1355 = vmatpush1.msra.mxu0 %v1253
      %1356 = vmatprep.subr.mxu0 0.0
      %1357 = vmatpush1.msra.mxu0 %v1252
      %1358 = vmatprep.subr.mxu0 0.0
      %1359 = vmatpush1.msra.mxu0 %v1251
      %1360 = vmatprep.subr.mxu0 0.0
      %1361 = vmatpush1.msra.mxu0 %v1250
      %1362 = vmatprep.subr.mxu0 0.0
      %1363 = vmatpush1.msra.mxu0 %v1249
      %1364 = vmatprep.subr.mxu0 0.0
      %1365 = vmatpush1.msra.mxu0 %v1248
      %1366 = vmatprep.subr.mxu0 0.0
      %1367 = vmatpush1.msra.mxu0 %v1247
      %1368 = vmatprep.subr.mxu0 0.0
      %1369 = vmatpush1.msra.mxu0 %v1246
      %1370 = vmatprep.subr.mxu0 0.0
      %1371 = vmatpush1.msra.mxu0 %v1245
      %1372 = vmatprep.subr.mxu0 0.0
      %1373 = vmatpush1.msra.mxu0 %v1244
      %1374 = vmatprep.subr.mxu0 0.0
      %1375 = vmatpush1.msra.mxu0 %v1243
      %1376 = vmatprep.subr.mxu0 0.0
      %1377 = vmatpush1.msra.mxu0 %v1242
      %1378 = vmatprep.subr.mxu0 0.0
      %1379 = vmatpush1.msra.mxu0 %v1241
      %1380 = vmatprep.subr.mxu0 0.0
      %1381 = vmatpush1.msra.mxu0 %v1240
      %1382 = vmatprep.subr.mxu0 0.0
      %1383 = vmatpush2.msra.mxu0 0.0
      %1384 = vmatprep.subr.mxu0 0.0
      %1385 = vmatpush2.msra.mxu0 0.0
      %1386 = vmatprep.subr.mxu0 0.0
      %1387 = vmatpush2.msra.mxu0 0.0
      %1388 = vmatprep.subr.mxu0 0.0
      %1389 = vmatpush2.msra.mxu0 0.0
      %1390 = vmatprep.subr.mxu0 0.0
      %1391 = vmatpush2.msra.mxu0 0.0
      %1392 = vmatprep.subr.mxu0 0.0
      %1393 = vmatpush2.msra.mxu0 0.0
      %1394 = vmatprep.subr.mxu0 0.0
      %1395 = vmatpush2.msra.mxu0 0.0
      %1396 = vmatprep.subr.mxu0 0.0
      %1397 = vmatpush2.msra.mxu0 0.0
      %1398 = vmatprep.subr.mxu0 0.0
      %1399 = vmatpush2.msra.mxu0 0.0
      %1400 = vmatprep.subr.mxu0 0.0
      %1401 = vmatpush2.msra.mxu0 0.0
      %1402 = vmatprep.subr.mxu0 0.0
      %1403 = vmatpush2.msra.mxu0 0.0
      %1404 = vmatprep.subr.mxu0 0.0
      %1405 = vmatpush2.msra.mxu0 0.0
      %1406 = vmatprep.subr.mxu0 0.0
      %1407 = vmatpush2.msra.mxu0 0.0
      %1408 = vmatprep.subr.mxu0 0.0
      %1409 = vmatpush2.msra.mxu0 0.0
      %1410 = vmatprep.subr.mxu0 0.0
      %1411 = vmatpush2.msra.mxu0 0.0
      %1412 = vmatprep.subr.mxu0 0.0
      %1413 = vmatpush2.msra.mxu0 0.0
      %1414 = vmatprep.mubr.f32.mxu0 0.0
      %1415 = vmatmul.mubr.f32.gmra.mxu0 %v1237
      %v1416 = vpop.f32.mrf.mxu0
      %v1417 = vadd.f32 %v1342, %v1416
      %v1418 = vpop.f32.mrf.mxu0
      %1419 = vmatprep.mubr.f32.mxu0 0.0
      %1420 = vmatmul.mubr.f32.gmra.mxu0 %v1238
      %v1421 = vpop.f32.mrf.mxu0
      %v1422 = vadd.f32 %v1347, %v1421
      %v1423 = vpop.f32.mrf.mxu0
      %1424 = vdwg.mxu0
      %v1425 = vld [vmem:[#allocation2 + $0x2] sm:$0xff]
      %v1426 = vld [vmem:[#allocation2 + $0xa] sm:$0xff]
      %s1427 = scalar_lea.vmem %s2, 640
      %v1428 = vld [vmem:[%s1427] sm:$0xff]
      %v1429 = vld [vmem:[%s1427 + $0x8] sm:$0xff]
      %v1430 = vld [vmem:[%s1427 + $0x10] sm:$0xff]
      %v1431 = vld [vmem:[%s1427 + $0x18] sm:$0xff]
      %v1432 = vld [vmem:[%s1427 + $0x20] sm:$0xff]
      %v1433 = vld [vmem:[%s1427 + $0x28] sm:$0xff]
      %v1434 = vld [vmem:[%s1427 + $0x30] sm:$0xff]
      %v1435 = vld [vmem:[%s1427 + $0x38] sm:$0xff]
      %v1436 = vld [vmem:[%s1427 + $0x40] sm:$0xff]
      %v1437 = vld [vmem:[%s1427 + $0x48] sm:$0xff]
      %v1438 = vld [vmem:[%s1427 + $0x50] sm:$0xff]
      %v1439 = vld [vmem:[%s1427 + $0x58] sm:$0xff]
      %v1440 = vld [vmem:[%s1427 + $0x60] sm:$0xff]
      %v1441 = vld [vmem:[%s1427 + $0x68] sm:$0xff]
      %v1442 = vld [vmem:[%s1427 + $0x70] sm:$0xff]
      %v1443 = vld [vmem:[%s1427 + $0x78] sm:$0xff]
      %1444 = vmatprep.subr.mxu0 0.0
      %1445 = vmatpush1.msra.mxu0 %v1443
      %1446 = vmatprep.subr.mxu0 0.0
      %1447 = vmatpush1.msra.mxu0 %v1442
      %1448 = vmatprep.subr.mxu0 0.0
      %1449 = vmatpush1.msra.mxu0 %v1441
      %1450 = vmatprep.subr.mxu0 0.0
      %1451 = vmatpush1.msra.mxu0 %v1440
      %1452 = vmatprep.subr.mxu0 0.0
      %1453 = vmatpush1.msra.mxu0 %v1439
      %1454 = vmatprep.subr.mxu0 0.0
      %1455 = vmatpush1.msra.mxu0 %v1438
      %1456 = vmatprep.subr.mxu0 0.0
      %1457 = vmatpush1.msra.mxu0 %v1437
      %1458 = vmatprep.subr.mxu0 0.0
      %1459 = vmatpush1.msra.mxu0 %v1436
      %1460 = vmatprep.subr.mxu0 0.0
      %1461 = vmatpush1.msra.mxu0 %v1435
      %1462 = vmatprep.subr.mxu0 0.0
      %1463 = vmatpush1.msra.mxu0 %v1434
      %1464 = vmatprep.subr.mxu0 0.0
      %1465 = vmatpush1.msra.mxu0 %v1433
      %1466 = vmatprep.subr.mxu0 0.0
      %1467 = vmatpush1.msra.mxu0 %v1432
      %1468 = vmatprep.subr.mxu0 0.0
      %1469 = vmatpush1.msra.mxu0 %v1431
      %1470 = vmatprep.subr.mxu0 0.0
      %1471 = vmatpush1.msra.mxu0 %v1430
      %1472 = vmatprep.subr.mxu0 0.0
      %1473 = vmatpush1.msra.mxu0 %v1429
      %1474 = vmatprep.subr.mxu0 0.0
      %1475 = vmatpush1.msra.mxu0 %v1428
      %1476 = vmatprep.subr.mxu0 0.0
      %1477 = vmatpush2.msra.mxu0 0.0
      %1478 = vmatprep.subr.mxu0 0.0
      %1479 = vmatpush2.msra.mxu0 0.0
      %1480 = vmatprep.subr.mxu0 0.0
      %1481 = vmatpush2.msra.mxu0 0.0
      %1482 = vmatprep.subr.mxu0 0.0
      %1483 = vmatpush2.msra.mxu0 0.0
      %1484 = vmatprep.subr.mxu0 0.0
      %1485 = vmatpush2.msra.mxu0 0.0
      %1486 = vmatprep.subr.mxu0 0.0
      %1487 = vmatpush2.msra.mxu0 0.0
      %1488 = vmatprep.subr.mxu0 0.0
      %1489 = vmatpush2.msra.mxu0 0.0
      %1490 = vmatprep.subr.mxu0 0.0
      %1491 = vmatpush2.msra.mxu0 0.0
      %1492 = vmatprep.subr.mxu0 0.0
      %1493 = vmatpush2.msra.mxu0 0.0
      %1494 = vmatprep.subr.mxu0 0.0
      %1495 = vmatpush2.msra.mxu0 0.0
      %1496 = vmatprep.subr.mxu0 0.0
      %1497 = vmatpush2.msra.mxu0 0.0
      %1498 = vmatprep.subr.mxu0 0.0
      %1499 = vmatpush2.msra.mxu0 0.0
      %1500 = vmatprep.subr.mxu0 0.0
      %1501 = vmatpush2.msra.mxu0 0.0
      %1502 = vmatprep.subr.mxu0 0.0
      %1503 = vmatpush2.msra.mxu0 0.0
      %1504 = vmatprep.subr.mxu0 0.0
      %1505 = vmatpush2.msra.mxu0 0.0
      %1506 = vmatprep.subr.mxu0 0.0
      %1507 = vmatpush2.msra.mxu0 0.0
      %1508 = vmatprep.mubr.f32.mxu0 0.0
      %1509 = vmatmul.mubr.f32.gmra.mxu0 %v1425
      %v1510 = vpop.f32.mrf.mxu0
      %v1511 = vadd.f32 0.0, %v1510
      %v1512 = vpop.f32.mrf.mxu0
      %1513 = vmatprep.mubr.f32.mxu0 0.0
      %1514 = vmatmul.mubr.f32.gmra.mxu0 %v1426
      %v1515 = vpop.f32.mrf.mxu0
      %v1516 = vadd.f32 0.0, %v1515
      %v1517 = vpop.f32.mrf.mxu0
      %1518 = vdwg.mxu0
      %v1519 = vadd.f32 %v1417, %v1511
      %v1520 = vadd.f32 %v1422, %v1516
      %s1521 = scalar_lea.vmem %s3, 1
      %v1522 = vld [vmem:[%s1521] sm:$0x1]
      %v1524 = vlaneseq
      %v1525 = vshrl.u32 %v1524, 7
      %v1526 = vsub.s32 0, %v1525
      %v1527 = vrot.slane %v1522, %v1526
      %v1529 = vadd.f32 %v1519, %v1527
      %v1530 = vadd.f32 %v1520, %v1527
      %vm1531 = vcmp.gt.f32.partialorder %v1529, 0.0
      %vm1532 = vcmp.gt.f32.partialorder %v1530, 0.0
      %v1533 = vmul.f32 %v1529, 0.2
      %v1534 = vmul.f32 %v1530, 0.2
      %v1535 = vsel %vm1531, %v1529, %v1533
      %v1536 = vsel %vm1532, %v1530, %v1534
      %1537 = vst [vmem:[#allocation2] sm:$0xff] 0.0
      %1538 = vst [vmem:[#allocation2 + $0x8] sm:$0xff] 0.0
      %1539 = vst [vmem:[#allocation2 + $0x10] sm:$0x3] 0.0
      %1540 = vst [vmem:[#allocation2 + $0x1] sm:$0xff] %v1535
      %1541 = vst [vmem:[#allocation2 + $0x9] sm:$0xff] %v1536
      %v1542 = vld [vmem:[#allocation2] sm:$0xff]
      %v1543 = vld [vmem:[#allocation2 + $0x8] sm:$0xff]
      %s1544 = scalar_lea.vmem %s4, 384
      %v1545 = vld [vmem:[%s1544] sm:$0xff]
      %v1546 = vld [vmem:[%s1544 + $0x8] sm:$0xff]
      %v1547 = vld [vmem:[%s1544 + $0x10] sm:$0xff]
      %v1548 = vld [vmem:[%s1544 + $0x18] sm:$0xff]
      %v1549 = vld [vmem:[%s1544 + $0x20] sm:$0xff]
      %v1550 = vld [vmem:[%s1544 + $0x28] sm:$0xff]
      %v1551 = vld [vmem:[%s1544 + $0x30] sm:$0xff]
      %v1552 = vld [vmem:[%s1544 + $0x38] sm:$0xff]
      %v1553 = vld [vmem:[%s1544 + $0x40] sm:$0xff]
      %v1554 = vld [vmem:[%s1544 + $0x48] sm:$0xff]
      %v1555 = vld [vmem:[%s1544 + $0x50] sm:$0xff]
      %v1556 = vld [vmem:[%s1544 + $0x58] sm:$0xff]
      %v1557 = vld [vmem:[%s1544 + $0x60] sm:$0xff]
      %v1558 = vld [vmem:[%s1544 + $0x68] sm:$0xff]
      %v1559 = vld [vmem:[%s1544 + $0x70] sm:$0xff]
      %v1560 = vld [vmem:[%s1544 + $0x78] sm:$0xff]
      %v1561 = vld [vmem:[#allocation2 + $0x1] sm:$0xff]
      %v1562 = vld [vmem:[#allocation2 + $0x9] sm:$0xff]
      %s1563 = scalar_lea.vmem %s4, 512
      %v1564 = vld [vmem:[%s1563] sm:$0xff]
      %v1565 = vld [vmem:[%s1563 + $0x8] sm:$0xff]
      %v1566 = vld [vmem:[%s1563 + $0x10] sm:$0xff]
      %v1567 = vld [vmem:[%s1563 + $0x18] sm:$0xff]
      %v1568 = vld [vmem:[%s1563 + $0x20] sm:$0xff]
      %v1569 = vld [vmem:[%s1563 + $0x28] sm:$0xff]
      %v1570 = vld [vmem:[%s1563 + $0x30] sm:$0xff]
      %v1571 = vld [vmem:[%s1563 + $0x38] sm:$0xff]
      %v1572 = vld [vmem:[%s1563 + $0x40] sm:$0xff]
      %v1573 = vld [vmem:[%s1563 + $0x48] sm:$0xff]
      %v1574 = vld [vmem:[%s1563 + $0x50] sm:$0xff]
      %v1575 = vld [vmem:[%s1563 + $0x58] sm:$0xff]
      %v1576 = vld [vmem:[%s1563 + $0x60] sm:$0xff]
      %v1577 = vld [vmem:[%s1563 + $0x68] sm:$0xff]
      %v1578 = vld [vmem:[%s1563 + $0x70] sm:$0xff]
      %v1579 = vld [vmem:[%s1563 + $0x78] sm:$0xff]
      %1580 = vmatprep.subr.mxu0 0.0
      %1581 = vmatpush1.msra.mxu0 %v1579
      %1582 = vmatprep.subr.mxu0 0.0
      %1583 = vmatpush1.msra.mxu0 %v1578
      %1584 = vmatprep.subr.mxu0 0.0
      %1585 = vmatpush1.msra.mxu0 %v1577
      %1586 = vmatprep.subr.mxu0 0.0
      %1587 = vmatpush1.msra.mxu0 %v1576
      %1588 = vmatprep.subr.mxu0 0.0
      %1589 = vmatpush1.msra.mxu0 %v1575
      %1590 = vmatprep.subr.mxu0 0.0
      %1591 = vmatpush1.msra.mxu0 %v1574
      %1592 = vmatprep.subr.mxu0 0.0
      %1593 = vmatpush1.msra.mxu0 %v1573
      %1594 = vmatprep.subr.mxu0 0.0
      %1595 = vmatpush1.msra.mxu0 %v1572
      %1596 = vmatprep.subr.mxu0 0.0
      %1597 = vmatpush1.msra.mxu0 %v1571
      %1598 = vmatprep.subr.mxu0 0.0
      %1599 = vmatpush1.msra.mxu0 %v1570
      %1600 = vmatprep.subr.mxu0 0.0
      %1601 = vmatpush1.msra.mxu0 %v1569
      %1602 = vmatprep.subr.mxu0 0.0
      %1603 = vmatpush1.msra.mxu0 %v1568
      %1604 = vmatprep.subr.mxu0 0.0
      %1605 = vmatpush1.msra.mxu0 %v1567
      %1606 = vmatprep.subr.mxu0 0.0
      %1607 = vmatpush1.msra.mxu0 %v1566
      %1608 = vmatprep.subr.mxu0 0.0
      %1609 = vmatpush1.msra.mxu0 %v1565
      %1610 = vmatprep.subr.mxu0 0.0
      %1611 = vmatpush1.msra.mxu0 %v1564
      %1612 = vmatprep.subr.mxu0 0.0
      %1613 = vmatpush2.msra.mxu0 0.0
      %1614 = vmatprep.subr.mxu0 0.0
      %1615 = vmatpush2.msra.mxu0 0.0
      %1616 = vmatprep.subr.mxu0 0.0
      %1617 = vmatpush2.msra.mxu0 0.0
      %1618 = vmatprep.subr.mxu0 0.0
      %1619 = vmatpush2.msra.mxu0 0.0
      %1620 = vmatprep.subr.mxu0 0.0
      %1621 = vmatpush2.msra.mxu0 0.0
      %1622 = vmatprep.subr.mxu0 0.0
      %1623 = vmatpush2.msra.mxu0 0.0
      %1624 = vmatprep.subr.mxu0 0.0
      %1625 = vmatpush2.msra.mxu0 0.0
      %1626 = vmatprep.subr.mxu0 0.0
      %1627 = vmatpush2.msra.mxu0 0.0
      %1628 = vmatprep.subr.mxu0 0.0
      %1629 = vmatpush2.msra.mxu0 0.0
      %1630 = vmatprep.subr.mxu0 0.0
      %1631 = vmatpush2.msra.mxu0 0.0
      %1632 = vmatprep.subr.mxu0 0.0
      %1633 = vmatpush2.msra.mxu0 0.0
      %1634 = vmatprep.subr.mxu0 0.0
      %1635 = vmatpush2.msra.mxu0 0.0
      %1636 = vmatprep.subr.mxu0 0.0
      %1637 = vmatpush2.msra.mxu0 0.0
      %1638 = vmatprep.subr.mxu0 0.0
      %1639 = vmatpush2.msra.mxu0 0.0
      %1640 = vmatprep.subr.mxu0 0.0
      %1641 = vmatpush2.msra.mxu0 0.0
      %1642 = vmatprep.subr.mxu0 0.0
      %1643 = vmatpush2.msra.mxu0 0.0
      %1644 = vmatprep.mubr.f32.mxu0 0.0
      %1645 = vmatmul.mubr.f32.gmra.mxu0 %v1561
      %v1646 = vpop.f32.mrf.mxu0
      %v1647 = vadd.f32 0.0, %v1646
      %v1648 = vpop.f32.mrf.mxu0
      %1649 = vmatprep.mubr.f32.mxu0 0.0
      %1650 = vmatmul.mubr.f32.gmra.mxu0 %v1562
      %v1651 = vpop.f32.mrf.mxu0
      %v1652 = vadd.f32 0.0, %v1651
      %v1653 = vpop.f32.mrf.mxu0
      %1654 = vdwg.mxu0
      %1655 = vmatprep.subr.mxu0 0.0
      %1656 = vmatpush1.msra.mxu0 %v1560
      %1657 = vmatprep.subr.mxu0 0.0
      %1658 = vmatpush1.msra.mxu0 %v1559
      %1659 = vmatprep.subr.mxu0 0.0
      %1660 = vmatpush1.msra.mxu0 %v1558
      %1661 = vmatprep.subr.mxu0 0.0
      %1662 = vmatpush1.msra.mxu0 %v1557
      %1663 = vmatprep.subr.mxu0 0.0
      %1664 = vmatpush1.msra.mxu0 %v1556
      %1665 = vmatprep.subr.mxu0 0.0
      %1666 = vmatpush1.msra.mxu0 %v1555
      %1667 = vmatprep.subr.mxu0 0.0
      %1668 = vmatpush1.msra.mxu0 %v1554
      %1669 = vmatprep.subr.mxu0 0.0
      %1670 = vmatpush1.msra.mxu0 %v1553
      %1671 = vmatprep.subr.mxu0 0.0
      %1672 = vmatpush1.msra.mxu0 %v1552
      %1673 = vmatprep.subr.mxu0 0.0
      %1674 = vmatpush1.msra.mxu0 %v1551
      %1675 = vmatprep.subr.mxu0 0.0
      %1676 = vmatpush1.msra.mxu0 %v1550
      %1677 = vmatprep.subr.mxu0 0.0
      %1678 = vmatpush1.msra.mxu0 %v1549
      %1679 = vmatprep.subr.mxu0 0.0
      %1680 = vmatpush1.msra.mxu0 %v1548
      %1681 = vmatprep.subr.mxu0 0.0
      %1682 = vmatpush1.msra.mxu0 %v1547
      %1683 = vmatprep.subr.mxu0 0.0
      %1684 = vmatpush1.msra.mxu0 %v1546
      %1685 = vmatprep.subr.mxu0 0.0
      %1686 = vmatpush1.msra.mxu0 %v1545
      %1687 = vmatprep.subr.mxu0 0.0
      %1688 = vmatpush2.msra.mxu0 0.0
      %1689 = vmatprep.subr.mxu0 0.0
      %1690 = vmatpush2.msra.mxu0 0.0
      %1691 = vmatprep.subr.mxu0 0.0
      %1692 = vmatpush2.msra.mxu0 0.0
      %1693 = vmatprep.subr.mxu0 0.0
      %1694 = vmatpush2.msra.mxu0 0.0
      %1695 = vmatprep.subr.mxu0 0.0
      %1696 = vmatpush2.msra.mxu0 0.0
      %1697 = vmatprep.subr.mxu0 0.0
      %1698 = vmatpush2.msra.mxu0 0.0
      %1699 = vmatprep.subr.mxu0 0.0
      %1700 = vmatpush2.msra.mxu0 0.0
      %1701 = vmatprep.subr.mxu0 0.0
      %1702 = vmatpush2.msra.mxu0 0.0
      %1703 = vmatprep.subr.mxu0 0.0
      %1704 = vmatpush2.msra.mxu0 0.0
      %1705 = vmatprep.subr.mxu0 0.0
      %1706 = vmatpush2.msra.mxu0 0.0
      %1707 = vmatprep.subr.mxu0 0.0
      %1708 = vmatpush2.msra.mxu0 0.0
      %1709 = vmatprep.subr.mxu0 0.0
      %1710 = vmatpush2.msra.mxu0 0.0
      %1711 = vmatprep.subr.mxu0 0.0
      %1712 = vmatpush2.msra.mxu0 0.0
      %1713 = vmatprep.subr.mxu0 0.0
      %1714 = vmatpush2.msra.mxu0 0.0
      %1715 = vmatprep.subr.mxu0 0.0
      %1716 = vmatpush2.msra.mxu0 0.0
      %1717 = vmatprep.subr.mxu0 0.0
      %1718 = vmatpush2.msra.mxu0 0.0
      %1719 = vmatprep.mubr.f32.mxu0 0.0
      %1720 = vmatmul.mubr.f32.gmra.mxu0 %v1542
      %v1721 = vpop.f32.mrf.mxu0
      %v1722 = vadd.f32 %v1647, %v1721
      %v1723 = vpop.f32.mrf.mxu0
      %1724 = vmatprep.mubr.f32.mxu0 0.0
      %1725 = vmatmul.mubr.f32.gmra.mxu0 %v1543
      %v1726 = vpop.f32.mrf.mxu0
      %v1727 = vadd.f32 %v1652, %v1726
      %v1728 = vpop.f32.mrf.mxu0
      %1729 = vdwg.mxu0
      %v1730 = vld [vmem:[#allocation2 + $0x2] sm:$0xff]
      %v1731 = vld [vmem:[#allocation2 + $0xa] sm:$0xff]
      %s1732 = scalar_lea.vmem %s4, 640
      %v1733 = vld [vmem:[%s1732] sm:$0xff]
      %v1734 = vld [vmem:[%s1732 + $0x8] sm:$0xff]
      %v1735 = vld [vmem:[%s1732 + $0x10] sm:$0xff]
      %v1736 = vld [vmem:[%s1732 + $0x18] sm:$0xff]
      %v1737 = vld [vmem:[%s1732 + $0x20] sm:$0xff]
      %v1738 = vld [vmem:[%s1732 + $0x28] sm:$0xff]
      %v1739 = vld [vmem:[%s1732 + $0x30] sm:$0xff]
      %v1740 = vld [vmem:[%s1732 + $0x38] sm:$0xff]
      %v1741 = vld [vmem:[%s1732 + $0x40] sm:$0xff]
      %v1742 = vld [vmem:[%s1732 + $0x48] sm:$0xff]
      %v1743 = vld [vmem:[%s1732 + $0x50] sm:$0xff]
      %v1744 = vld [vmem:[%s1732 + $0x58] sm:$0xff]
      %v1745 = vld [vmem:[%s1732 + $0x60] sm:$0xff]
      %v1746 = vld [vmem:[%s1732 + $0x68] sm:$0xff]
      %v1747 = vld [vmem:[%s1732 + $0x70] sm:$0xff]
      %v1748 = vld [vmem:[%s1732 + $0x78] sm:$0xff]
      %1749 = vmatprep.subr.mxu0 0.0
      %1750 = vmatpush1.msra.mxu0 %v1748
      %1751 = vmatprep.subr.mxu0 0.0
      %1752 = vmatpush1.msra.mxu0 %v1747
      %1753 = vmatprep.subr.mxu0 0.0
      %1754 = vmatpush1.msra.mxu0 %v1746
      %1755 = vmatprep.subr.mxu0 0.0
      %1756 = vmatpush1.msra.mxu0 %v1745
      %1757 = vmatprep.subr.mxu0 0.0
      %1758 = vmatpush1.msra.mxu0 %v1744
      %1759 = vmatprep.subr.mxu0 0.0
      %1760 = vmatpush1.msra.mxu0 %v1743
      %1761 = vmatprep.subr.mxu0 0.0
      %1762 = vmatpush1.msra.mxu0 %v1742
      %1763 = vmatprep.subr.mxu0 0.0
      %1764 = vmatpush1.msra.mxu0 %v1741
      %1765 = vmatprep.subr.mxu0 0.0
      %1766 = vmatpush1.msra.mxu0 %v1740
      %1767 = vmatprep.subr.mxu0 0.0
      %1768 = vmatpush1.msra.mxu0 %v1739
      %1769 = vmatprep.subr.mxu0 0.0
      %1770 = vmatpush1.msra.mxu0 %v1738
      %1771 = vmatprep.subr.mxu0 0.0
      %1772 = vmatpush1.msra.mxu0 %v1737
      %1773 = vmatprep.subr.mxu0 0.0
      %1774 = vmatpush1.msra.mxu0 %v1736
      %1775 = vmatprep.subr.mxu0 0.0
      %1776 = vmatpush1.msra.mxu0 %v1735
      %1777 = vmatprep.subr.mxu0 0.0
      %1778 = vmatpush1.msra.mxu0 %v1734
      %1779 = vmatprep.subr.mxu0 0.0
      %1780 = vmatpush1.msra.mxu0 %v1733
      %1781 = vmatprep.subr.mxu0 0.0
      %1782 = vmatpush2.msra.mxu0 0.0
      %1783 = vmatprep.subr.mxu0 0.0
      %1784 = vmatpush2.msra.mxu0 0.0
      %1785 = vmatprep.subr.mxu0 0.0
      %1786 = vmatpush2.msra.mxu0 0.0
      %1787 = vmatprep.subr.mxu0 0.0
      %1788 = vmatpush2.msra.mxu0 0.0
      %1789 = vmatprep.subr.mxu0 0.0
      %1790 = vmatpush2.msra.mxu0 0.0
      %1791 = vmatprep.subr.mxu0 0.0
      %1792 = vmatpush2.msra.mxu0 0.0
      %1793 = vmatprep.subr.mxu0 0.0
      %1794 = vmatpush2.msra.mxu0 0.0
      %1795 = vmatprep.subr.mxu0 0.0
      %1796 = vmatpush2.msra.mxu0 0.0
      %1797 = vmatprep.subr.mxu0 0.0
      %1798 = vmatpush2.msra.mxu0 0.0
      %1799 = vmatprep.subr.mxu0 0.0
      %1800 = vmatpush2.msra.mxu0 0.0
      %1801 = vmatprep.subr.mxu0 0.0
      %1802 = vmatpush2.msra.mxu0 0.0
      %1803 = vmatprep.subr.mxu0 0.0
      %1804 = vmatpush2.msra.mxu0 0.0
      %1805 = vmatprep.subr.mxu0 0.0
      %1806 = vmatpush2.msra.mxu0 0.0
      %1807 = vmatprep.subr.mxu0 0.0
      %1808 = vmatpush2.msra.mxu0 0.0
      %1809 = vmatprep.subr.mxu0 0.0
      %1810 = vmatpush2.msra.mxu0 0.0
      %1811 = vmatprep.subr.mxu0 0.0
      %1812 = vmatpush2.msra.mxu0 0.0
      %1813 = vmatprep.mubr.f32.mxu0 0.0
      %1814 = vmatmul.mubr.f32.gmra.mxu0 %v1730
      %v1815 = vpop.f32.mrf.mxu0
      %v1816 = vadd.f32 0.0, %v1815
      %v1817 = vpop.f32.mrf.mxu0
      %1818 = vmatprep.mubr.f32.mxu0 0.0
      %1819 = vmatmul.mubr.f32.gmra.mxu0 %v1731
      %v1820 = vpop.f32.mrf.mxu0
      %v1821 = vadd.f32 0.0, %v1820
      %v1822 = vpop.f32.mrf.mxu0
      %1823 = vdwg.mxu0
      %v1824 = vadd.f32 %v1722, %v1816
      %v1825 = vadd.f32 %v1727, %v1821
      %s1826 = scalar_lea.vmem %s5, 1
      %v1827 = vld [vmem:[%s1826] sm:$0x1]
      %v1829 = vlaneseq
      %v1830 = vshrl.u32 %v1829, 7
      %v1831 = vsub.s32 0, %v1830
      %v1832 = vrot.slane %v1827, %v1831
      %v1834 = vadd.f32 %v1824, %v1832
      %v1835 = vadd.f32 %v1825, %v1832
      %s1836 = scalar_lea.vmem %s6, 128
      %v1837 = vld [vmem:[%s1836] sm:$0xff]
      %v1838 = vld [vmem:[%s1836 + $0x8] sm:$0xff]
      %v1839 = vld [vmem:[%s1836 + $0x10] sm:$0xff]
      %v1840 = vld [vmem:[%s1836 + $0x18] sm:$0xff]
      %v1841 = vld [vmem:[%s1836 + $0x20] sm:$0xff]
      %v1842 = vld [vmem:[%s1836 + $0x28] sm:$0xff]
      %v1843 = vld [vmem:[%s1836 + $0x30] sm:$0xff]
      %v1844 = vld [vmem:[%s1836 + $0x38] sm:$0xff]
      %v1845 = vld [vmem:[%s1836 + $0x40] sm:$0xff]
      %v1846 = vld [vmem:[%s1836 + $0x48] sm:$0xff]
      %v1847 = vld [vmem:[%s1836 + $0x50] sm:$0xff]
      %v1848 = vld [vmem:[%s1836 + $0x58] sm:$0xff]
      %v1849 = vld [vmem:[%s1836 + $0x60] sm:$0xff]
      %v1850 = vld [vmem:[%s1836 + $0x68] sm:$0xff]
      %v1851 = vld [vmem:[%s1836 + $0x70] sm:$0xff]
      %v1852 = vld [vmem:[%s1836 + $0x78] sm:$0xff]
      %s1853 = scalar_lea.vmem %s7, 1
      %v1854 = vld [vmem:[%s1853] sm:$0x1]
      %v1856 = vlaneseq
      %v1857 = vshrl.u32 %v1856, 7
      %v1858 = vsub.s32 0, %v1857
      %v1859 = vrot.slane %v1854, %v1858
      %1861 = vmatprep.subr.mxu0 0.0
      %1862 = vmatpush1.msra.mxu0 %v1852
      %1863 = vmatprep.subr.mxu0 0.0
      %1864 = vmatpush1.msra.mxu0 %v1851
      %1865 = vmatprep.subr.mxu0 0.0
      %1866 = vmatpush1.msra.mxu0 %v1850
      %1867 = vmatprep.subr.mxu0 0.0
      %1868 = vmatpush1.msra.mxu0 %v1849
      %1869 = vmatprep.subr.mxu0 0.0
      %1870 = vmatpush1.msra.mxu0 %v1848
      %1871 = vmatprep.subr.mxu0 0.0
      %1872 = vmatpush1.msra.mxu0 %v1847
      %1873 = vmatprep.subr.mxu0 0.0
      %1874 = vmatpush1.msra.mxu0 %v1846
      %1875 = vmatprep.subr.mxu0 0.0
      %1876 = vmatpush1.msra.mxu0 %v1845
      %1877 = vmatprep.subr.mxu0 0.0
      %1878 = vmatpush1.msra.mxu0 %v1844
      %1879 = vmatprep.subr.mxu0 0.0
      %1880 = vmatpush1.msra.mxu0 %v1843
      %1881 = vmatprep.subr.mxu0 0.0
      %1882 = vmatpush1.msra.mxu0 %v1842
      %1883 = vmatprep.subr.mxu0 0.0
      %1884 = vmatpush1.msra.mxu0 %v1841
      %1885 = vmatprep.subr.mxu0 0.0
      %1886 = vmatpush1.msra.mxu0 %v1840
      %1887 = vmatprep.subr.mxu0 0.0
      %1888 = vmatpush1.msra.mxu0 %v1839
      %1889 = vmatprep.subr.mxu0 0.0
      %1890 = vmatpush1.msra.mxu0 %v1838
      %1891 = vmatprep.subr.mxu0 0.0
      %1892 = vmatpush1.msra.mxu0 %v1837
      %1893 = vmatprep.subr.mxu0 0.0
      %1894 = vmatpush2.msra.mxu0 0.0
      %1895 = vmatprep.subr.mxu0 0.0
      %1896 = vmatpush2.msra.mxu0 0.0
      %1897 = vmatprep.subr.mxu0 0.0
      %1898 = vmatpush2.msra.mxu0 0.0
      %1899 = vmatprep.subr.mxu0 0.0
      %1900 = vmatpush2.msra.mxu0 0.0
      %1901 = vmatprep.subr.mxu0 0.0
      %1902 = vmatpush2.msra.mxu0 0.0
      %1903 = vmatprep.subr.mxu0 0.0
      %1904 = vmatpush2.msra.mxu0 0.0
      %1905 = vmatprep.subr.mxu0 0.0
      %1906 = vmatpush2.msra.mxu0 0.0
      %1907 = vmatprep.subr.mxu0 0.0
      %1908 = vmatpush2.msra.mxu0 0.0
      %1909 = vmatprep.subr.mxu0 0.0
      %1910 = vmatpush2.msra.mxu0 0.0
      %1911 = vmatprep.subr.mxu0 0.0
      %1912 = vmatpush2.msra.mxu0 0.0
      %1913 = vmatprep.subr.mxu0 0.0
      %1914 = vmatpush2.msra.mxu0 0.0
      %1915 = vmatprep.subr.mxu0 0.0
      %1916 = vmatpush2.msra.mxu0 0.0
      %1917 = vmatprep.subr.mxu0 0.0
      %1918 = vmatpush2.msra.mxu0 0.0
      %1919 = vmatprep.subr.mxu0 0.0
      %1920 = vmatpush2.msra.mxu0 0.0
      %1921 = vmatprep.subr.mxu0 0.0
      %1922 = vmatpush2.msra.mxu0 0.0
      %1923 = vmatprep.subr.mxu0 0.0
      %1924 = vmatpush2.msra.mxu0 0.0
      %1925 = vmatprep.mubr.f32.mxu0 0.0
      %1926 = vmatmul.mubr.f32.gmra.mxu0 %v1230
      %v1927 = vpop.f32.mrf.mxu0
      %v1928 = vadd.f32 %v1859, %v1927
      %v1929 = vpop.f32.mrf.mxu0
      %1930 = vmatprep.mubr.f32.mxu0 0.0
      %1931 = vmatmul.mubr.f32.gmra.mxu0 %v1231
      %v1932 = vpop.f32.mrf.mxu0
      %v1933 = vadd.f32 %v1859, %v1932
      %v1934 = vpop.f32.mrf.mxu0
      %1935 = vdwg.mxu0
      %vm1936 = vcmp.gt.f32.partialorder %v1928, 0.0
      %vm1937 = vcmp.gt.f32.partialorder %v1933, 0.0
      %v1938 = vmul.f32 %v1928, 0.2
      %v1939 = vmul.f32 %v1933, 0.2
      %v1940 = vsel %vm1936, %v1928, %v1938
      %v1941 = vsel %vm1937, %v1933, %v1939
      %s1942 = scalar_lea.vmem %s8, 128
      %v1943 = vld [vmem:[%s1942] sm:$0xff]
      %v1944 = vld [vmem:[%s1942 + $0x8] sm:$0xff]
      %v1945 = vld [vmem:[%s1942 + $0x10] sm:$0xff]
      %v1946 = vld [vmem:[%s1942 + $0x18] sm:$0xff]
      %v1947 = vld [vmem:[%s1942 + $0x20] sm:$0xff]
      %v1948 = vld [vmem:[%s1942 + $0x28] sm:$0xff]
      %v1949 = vld [vmem:[%s1942 + $0x30] sm:$0xff]
      %v1950 = vld [vmem:[%s1942 + $0x38] sm:$0xff]
      %v1951 = vld [vmem:[%s1942 + $0x40] sm:$0xff]
      %v1952 = vld [vmem:[%s1942 + $0x48] sm:$0xff]
      %v1953 = vld [vmem:[%s1942 + $0x50] sm:$0xff]
      %v1954 = vld [vmem:[%s1942 + $0x58] sm:$0xff]
      %v1955 = vld [vmem:[%s1942 + $0x60] sm:$0xff]
      %v1956 = vld [vmem:[%s1942 + $0x68] sm:$0xff]
      %v1957 = vld [vmem:[%s1942 + $0x70] sm:$0xff]
      %v1958 = vld [vmem:[%s1942 + $0x78] sm:$0xff]
      %s1959 = scalar_lea.vmem %s9, 1
      %v1960 = vld [vmem:[%s1959] sm:$0x1]
      %v1962 = vlaneseq
      %v1963 = vshrl.u32 %v1962, 7
      %v1964 = vsub.s32 0, %v1963
      %v1965 = vrot.slane %v1960, %v1964
      %1967 = vmatprep.subr.mxu0 0.0
      %1968 = vmatpush1.msra.mxu0 %v1958
      %1969 = vmatprep.subr.mxu0 0.0
      %1970 = vmatpush1.msra.mxu0 %v1957
      %1971 = vmatprep.subr.mxu0 0.0
      %1972 = vmatpush1.msra.mxu0 %v1956
      %1973 = vmatprep.subr.mxu0 0.0
      %1974 = vmatpush1.msra.mxu0 %v1955
      %1975 = vmatprep.subr.mxu0 0.0
      %1976 = vmatpush1.msra.mxu0 %v1954
      %1977 = vmatprep.subr.mxu0 0.0
      %1978 = vmatpush1.msra.mxu0 %v1953
      %1979 = vmatprep.subr.mxu0 0.0
      %1980 = vmatpush1.msra.mxu0 %v1952
      %1981 = vmatprep.subr.mxu0 0.0
      %1982 = vmatpush1.msra.mxu0 %v1951
      %1983 = vmatprep.subr.mxu0 0.0
      %1984 = vmatpush1.msra.mxu0 %v1950
      %1985 = vmatprep.subr.mxu0 0.0
      %1986 = vmatpush1.msra.mxu0 %v1949
      %1987 = vmatprep.subr.mxu0 0.0
      %1988 = vmatpush1.msra.mxu0 %v1948
      %1989 = vmatprep.subr.mxu0 0.0
      %1990 = vmatpush1.msra.mxu0 %v1947
      %1991 = vmatprep.subr.mxu0 0.0
      %1992 = vmatpush1.msra.mxu0 %v1946
      %1993 = vmatprep.subr.mxu0 0.0
      %1994 = vmatpush1.msra.mxu0 %v1945
      %1995 = vmatprep.subr.mxu0 0.0
      %1996 = vmatpush1.msra.mxu0 %v1944
      %1997 = vmatprep.subr.mxu0 0.0
      %1998 = vmatpush1.msra.mxu0 %v1943
      %1999 = vmatprep.subr.mxu0 0.0
      %2000 = vmatpush2.msra.mxu0 0.0
      %2001 = vmatprep.subr.mxu0 0.0
      %2002 = vmatpush2.msra.mxu0 0.0
      %2003 = vmatprep.subr.mxu0 0.0
      %2004 = vmatpush2.msra.mxu0 0.0
      %2005 = vmatprep.subr.mxu0 0.0
      %2006 = vmatpush2.msra.mxu0 0.0
      %2007 = vmatprep.subr.mxu0 0.0
      %2008 = vmatpush2.msra.mxu0 0.0
      %2009 = vmatprep.subr.mxu0 0.0
      %2010 = vmatpush2.msra.mxu0 0.0
      %2011 = vmatprep.subr.mxu0 0.0
      %2012 = vmatpush2.msra.mxu0 0.0
      %2013 = vmatprep.subr.mxu0 0.0
      %2014 = vmatpush2.msra.mxu0 0.0
      %2015 = vmatprep.subr.mxu0 0.0
      %2016 = vmatpush2.msra.mxu0 0.0
      %2017 = vmatprep.subr.mxu0 0.0
      %2018 = vmatpush2.msra.mxu0 0.0
      %2019 = vmatprep.subr.mxu0 0.0
      %2020 = vmatpush2.msra.mxu0 0.0
      %2021 = vmatprep.subr.mxu0 0.0
      %2022 = vmatpush2.msra.mxu0 0.0
      %2023 = vmatprep.subr.mxu0 0.0
      %2024 = vmatpush2.msra.mxu0 0.0
      %2025 = vmatprep.subr.mxu0 0.0
      %2026 = vmatpush2.msra.mxu0 0.0
      %2027 = vmatprep.subr.mxu0 0.0
      %2028 = vmatpush2.msra.mxu0 0.0
      %2029 = vmatprep.subr.mxu0 0.0
      %2030 = vmatpush2.msra.mxu0 0.0
      %2031 = vmatprep.mubr.f32.mxu0 0.0
      %2032 = vmatmul.mubr.f32.gmra.mxu0 %v1940
      %v2033 = vpop.f32.mrf.mxu0
      %v2034 = vadd.f32 %v1965, %v2033
      %v2035 = vpop.f32.mrf.mxu0
      %2036 = vmatprep.mubr.f32.mxu0 0.0
      %2037 = vmatmul.mubr.f32.gmra.mxu0 %v1941
      %v2038 = vpop.f32.mrf.mxu0
      %v2039 = vadd.f32 %v1965, %v2038
      %v2040 = vpop.f32.mrf.mxu0
      %2041 = vdwg.mxu0
      %v2042 = vmul.f32 %v1834, %v2034
      %v2043 = vmul.f32 %v1835, %v2039
      %v2044 = vadd.f32 %v1228, %v2042
      %v2045 = vadd.f32 %v1229, %v2043
      %v2046 = vadd.f32 %v1230, %v2034
      %v2047 = vadd.f32 %v1231, %v2039
      %v2048 = vmul.f32 %v2044, 2.0
      %v2049 = vmul.f32 %v2045, 2.0
      %2050 = vst [vmem:[%s414] sm:$0xff] %v2048
      %2051 = vst [vmem:[%s414 + $0x8] sm:$0xff] %v2049
      %v2052 = vmul.f32 %v2046, 2.0
      %v2053 = vmul.f32 %v2047, 2.0
      %2054 = vst [vmem:[%s419] sm:$0xff] %v2052
      %2055 = vst [vmem:[%s419 + $0x8] sm:$0xff] %v2053
      %p2056 = scmp.lt.s32.totalorder %s23, 1
      %s2057 = scalar_select %p2056, %s23, 1
      %s2058 = smul.addr %s2057, 2
      %s2059 = smul.addr %s2058, 8
      %s2060 = scalar_lea.vmem %s10, %s2059
      %p2061 = scmp.lt.s32.totalorder %s23, 1
      %s2062 = scalar_select %p2061, %s23, 1
      %s2063 = smul.addr %s2062, 2
      %s2064 = smul.addr %s2063, 8
      %s2065 = scalar_lea.vmem %s11, %s2064
      // Predicated region
      $region61: #{_lambda_.1} parent=59 // pred_check
        %p2066 = pneg %p261
      $region62: #{_lambda_.1} parent=59 // pred_check_branch
        %2068 = sbr.rel (%p2066) target = $region64
      $region63: #{_lambda_.1} parent=59 // pred_region
        _
      $region64: #{_lambda_.1} parent=59 // pred_fallthru
        _
      // Predicated region
      $region65: #{_lambda_.1} parent=59 // pred_check
        %p2069 = pneg %p287
      $region66: #{_lambda_.1} parent=59 // pred_check_branch
        %2071 = sbr.rel (%p2069) target = $region68
      $region67: #{_lambda_.1} parent=59 // pred_region
        _
      $region68: #{_lambda_.1} parent=59 // pred_fallthru
        _
    $region60: #{_lambda_.1} parent=5 // pred_fallthru
      _
    %p2072 = scmp.le.s32.totalorder 2, %s18
    // Predicated region
    $region69: #{_lambda_.1} parent=5 // pred_check
      %p2073 = pneg %p2072
    $region70: #{_lambda_.1} parent=5 // pred_check_branch
      %2075 = sbr.rel (%p2073) target = $region72
    $region71: #{_lambda_.1} parent=5 // pred_region
      %s2076 = ssub.s32 %s18, 2
      // Predicated region
      $region73: #{_lambda_.1} parent=71 // pred_check
        %p2077 = pneg %p267
      $region74: #{_lambda_.1} parent=71 // pred_check_branch
        %2079 = sbr.rel (%p2077) target = $region76
      $region75: #{_lambda_.1} parent=71 // pred_region
        %p2080 = scmp.lt.s32.totalorder %s24, 1
        %s2081 = scalar_select %p2080, %s24, 1
        %s2082 = smul.addr %s2081, 2
        %s2083 = smul.addr %s2082, 8
        %s2084 = scalar_lea.vmem %s10, %s2083
      $region76: #{_lambda_.1} parent=71 // pred_fallthru
        _
      // Predicated region
      $region77: #{_lambda_.1} parent=71 // pred_check
        %p2085 = pneg %p293
      $region78: #{_lambda_.1} parent=71 // pred_check_branch
        %2087 = sbr.rel (%p2085) target = $region80
      $region79: #{_lambda_.1} parent=71 // pred_region
        %p2088 = scmp.lt.s32.totalorder %s24, 1
        %s2089 = scalar_select %p2088, %s24, 1
        %s2090 = smul.addr %s2089, 2
        %s2091 = smul.addr %s2090, 8
        %s2092 = scalar_lea.vmem %s11, %s2091
      $region80: #{_lambda_.1} parent=71 // pred_fallthru
        _
    $region72: #{_lambda_.1} parent=5 // pred_fallthru
      _
  $region6: #{_lambda_.1} parent=0 // loop_footer
    %s22 = sadd.s32 1, %s18
  $region7: #{_lambda_.1} parent=0 // loop_footer_branch
    %17 = sbr.rel target = $region3
  $region8: #{_lambda_.1} parent=0 // loop_exit
    _

</llo_original>
